<compile_context>
chip_gen: v6e
topology: v6e:2x2x1
jax: 0.10.0
libtpu: 0.0.40
codegen_flags: <defaults>
</compile_context>

<pallas_src>
import jax
import jax.numpy as jnp
from jax.experimental import pallas as pl
from jax.experimental.pallas import tpu as pltpu

# ------------------------- configuration -------------------------
LAT_SIZE = 128            # lat_size (kept a multiple of 128 for lane alignment)
LETTER_CHANNELS = 4
LETTER_BITS = 16
N_LAYERS = 4
C = LETTER_CHANNELS * LETTER_BITS          # 64 channels
N_RES = N_LAYERS - 1                       # 3 identity residual blocks (64->64)
NEG_SLOPE = 0.2
RES_SCALE = 0.1
MAX_BATCH_PER_STEP = 16384 // LAT_SIZE     # 128 batch rows -> 16384-lane slab (4 MiB f32)


def _lrelu(v):
    return jnp.maximum(v, NEG_SLOPE * v)


def _num_tensorcores():
    """Best-effort TensorCore count of the default device (v7x / megacore = 2)."""
    try:
        kind = jax.devices()[0].device_kind.lower()
    except Exception:
        return 1
    return 2 if ("v7" in kind or "v4" in kind or "v5p" in kind) else 1


def _pick_nb(batch, num_tc):
    """Batch rows per grid step: largest block that fits; on 2-TC chips prefer an
    even/balanced step count so both TensorCores get equal work."""
    max_nb = min(batch, MAX_BATCH_PER_STEP)
    for nb in range(max_nb, 0, -1):                          # balanced across cores
        if batch % nb == 0 and (batch // nb) % num_tc == 0:
            return nb
    for nb in range(max_nb, 0, -1):                          # fallback: any divisor
        if batch % nb == 0:
            return nb
    return 1


def letter_decoder_kernel(scalars_ref,                        # SMEM: [b0_l, 0.1*w1_l, 0.1*b1_l]
                          x_ref,                              # (nb, C, L) f32 natural layout
                          w0s_ref, b0s_ref, w1s_ref, b1s_ref,  # 3 stacked 64->64 blocks
                          wsl_ref, w0l_ref,                    # final-block weights
                          o_ref,                               # (1, nb*L) f32
                          pk_ref):                             # VMEM (C, nb*L) f32 scratch
    nb = x_ref.shape[0]

    # Repack (nb, C, L) -> (C, nb*L) in VMEM.  Each (C, L)=(64,128) per-batch slab is
    # copied into its own 128-lane slice: tile-aligned vreg moves, no HBM transpose.
    for b in range(nb):                                        # nb is static -> unrolled
        pk_ref[:, b * LAT_SIZE:(b + 1) * LAT_SIZE] = x_ref[b]
    x = pk_ref[...]                                            # (C, TN) f32

    # n_layers-1 residual blocks: fin=fout=fhidden=C, identity shortcut.
    # RES_SCALE is pre-folded into w1/b1 by the wrapper, so the update is x += h.
    for i in range(N_RES):                                     # static unroll (3 blocks)
        lx = _lrelu(x).astype(jnp.bfloat16)
        h = jnp.dot(w0s_ref[i], lx, preferred_element_type=jnp.float32) + b0s_ref[i]
        lh = _lrelu(h).astype(jnp.bfloat16)
        x = x + jnp.dot(w1s_ref[i], lh, preferred_element_type=jnp.float32) + b1s_ref[i]

    # Final block: fin=C, fout=1, fhidden=min(C,1)=1, learned shortcut (no bias).
    # Shortcut in f32 (M=1 matmul): negligible cost, dominant accuracy contributor.
    x_s = jnp.dot(wsl_ref[...], x, preferred_element_type=jnp.float32)       # (1, TN) f32
    lx = _lrelu(x).astype(jnp.bfloat16)
    h = jnp.dot(w0l_ref[...], lx, preferred_element_type=jnp.float32) + scalars_ref[0]
    # 1->1 conv == scale + bias (already scaled by RES_SCALE in the wrapper).
    o_ref[...] = x_s + scalars_ref[1] * _lrelu(h) + scalars_ref[2]           # lane-dense store


def letter_decoder(letters, params):
    """letters: (B, letter_channels, letter_bits, lat_size) float32 -> (B, lat_size)."""
    B = letters.shape[0]
    x = letters.reshape(B, C, LAT_SIZE)          # contiguous view: no data movement

    (w0s, b0s, w1s, b1s, ws_l, w0_l, b0_l, w1_l, b1_l) = params
    # bf16 MXU operands for the 64->64 blocks; fold the 0.1 residual scale into w1/b1.
    w0s_bf = w0s.astype(jnp.bfloat16)
    w1s_bf = (RES_SCALE * w1s).astype(jnp.bfloat16)
    b1s_sc = (RES_SCALE * b1s).astype(jnp.float32)
    w0l_bf = w0_l.astype(jnp.bfloat16)
    ws_l32 = ws_l.astype(jnp.float32)            # f32 shortcut weight (accuracy)
    scalars = jnp.stack([b0_l[0, 0], RES_SCALE * w1_l[0, 0],
                         RES_SCALE * b1_l[0, 0]]).astype(jnp.float32)          # SMEM

    num_tc = _num_tensorcores()
    nb = _pick_nb(B, num_tc)                     # batch rows per grid step
    tn = nb * LAT_SIZE                           # lanes per step (multiple of 128)
    grid = (B // nb,)

    full = lambda shape: pl.BlockSpec(shape, lambda j: (0,) * len(shape))
    smem_spec = pl.BlockSpec(memory_space=pltpu.MemorySpace.SMEM)

    flops = int(2 * B * LAT_SIZE * (6 * C * C + 2 * C))
    bytes_accessed = int(B * C * LAT_SIZE * 4 + B * LAT_SIZE * 4
                         + 2 * N_RES * C * C * 2 + 2 * N_RES * C * 4 + 2 * C * 4 + 12)

    out = pl.pallas_call(
        letter_decoder_kernel,
        out_shape=jax.ShapeDtypeStruct((1, B * LAT_SIZE), jnp.float32),
        grid=grid,
        in_specs=[
            smem_spec,                                            # epilogue scalars (SMEM)
            pl.BlockSpec((nb, C, LAT_SIZE), lambda j: (j, 0, 0)), # natural-layout batch group
            full((N_RES, C, C)),                                  # w0 stack (bf16, resident)
            full((N_RES, C, 1)),                                  # b0 stack (f32)
            full((N_RES, C, C)),                                  # 0.1*w1 stack (bf16)
            full((N_RES, C, 1)),                                  # 0.1*b1 stack (f32)
            full((1, C)),                                         # final shortcut weight (f32)
            full((1, C)),                                         # final conv_0 weight (bf16)
        ],
        out_specs=pl.BlockSpec((1, tn), lambda j: (0, j)),        # lane-dense output slab
        scratch_shapes=[pltpu.VMEM((C, tn), jnp.float32)],        # lane-packed activation slab
        compiler_params=pltpu.CompilerParams(
            dimension_semantics=(pltpu.PARALLEL,),
            vmem_limit_bytes=48 * 1024 * 1024),
        cost_estimate=pl.CostEstimate(flops=flops, transcendentals=0,
                                      bytes_accessed=bytes_accessed),
    )(scalars, x, w0s_bf, b0s, w1s_bf, b1s_sc, ws_l32, w0l_bf)

    # out[0, b*L + l] == lat[b, l]  -> contiguous reshape (no transpose), == squeeze(dim=1)
    return out.reshape(B, LAT_SIZE)


def init_params(key):
    """Deterministic init mimicking PyTorch's default uniform(-1/sqrt(fan_in), +)."""
    ks = jax.random.split(key, 9)
    bC = 1.0 / jnp.sqrt(jnp.float32(C))
    u = lambda k, shape, bound: jax.random.uniform(k, shape, jnp.float32, -bound, bound)
    w0s = u(ks[0], (N_RES, C, C), bC)
    b0s = u(ks[1], (N_RES, C, 1), bC)
    w1s = u(ks[2], (N_RES, C, C), bC)
    b1s = u(ks[3], (N_RES, C, 1), bC)
    ws_l = u(ks[4], (1, C), bC)          # shortcut conv, bias=False
    w0_l = u(ks[5], (1, C), bC)
    b0_l = u(ks[6], (1, 1), bC)
    w1_l = u(ks[7], (1, 1), 1.0)         # fan_in = 1
    b1_l = u(ks[8], (1, 1), 1.0)
    return (w0s, b0s, w1s, b1s, ws_l, w0_l, b0_l, w1_l, b1_l)


def letter_decoder_ref(letters, params):
    """Pure-JAX f32 reference of the PyTorch math (for correctness check)."""
    (w0s, b0s, w1s, b1s, ws_l, w0_l, b0_l, w1_l, b1_l) = params
    B = letters.shape[0]
    x = letters.reshape(B, C, LAT_SIZE)
    lrelu = lambda v: jnp.where(v > 0, v, NEG_SLOPE * v)
    for i in range(N_RES):
        h = jnp.einsum('oc,bcl->bol', w0s[i], lrelu(x)) + b0s[i][None]
        h = jnp.einsum('oc,bcl->bol', w1s[i], lrelu(h)) + b1s[i][None]
        x = x + RES_SCALE * h
    x_s = jnp.einsum('oc,bcl->bol', ws_l, x)
    h = jnp.einsum('oc,bcl->bol', w0_l, lrelu(x)) + b0_l[None]
    h = w1_l[None] * lrelu(h) + b1_l[None]
    out = x_s + RES_SCALE * h
    return out[:, 0, :]


if __name__ == "__main__":
    key = jax.random.PRNGKey(0)
    k_in, k_par = jax.random.split(key)

    # Input: (batch, letter_channels, letter_bits, lat_size) -> viewed as (B, 64, lat_size)
    letters = jax.random.normal(k_in, (2, LETTER_CHANNELS, LETTER_BITS, LAT_SIZE), jnp.float32)
    params = init_params(k_par)

    lat = jax.jit(letter_decoder)(letters, params)
    lat = jax.block_until_ready(lat)

    ref = letter_decoder_ref(letters, params)
    assert lat.shape == (2, LAT_SIZE), lat.shape
    # bf16 MXU operands on the residual path: loosened tolerance vs the f32 reference
    # (the f32 shortcut keeps the actual error well below this).
    assert jnp.allclose(lat, ref, atol=2e-2, rtol=2e-2), float(jnp.max(jnp.abs(lat - ref)))

    print("KERNEL_OK")
</pallas_src>

<mosaic_0001>
module attributes {stable_mosaic.version = 11 : i64} {
  func.func @letter_decoder_kernel(%arg0: i32, %arg1: memref<3xf32, #tpu.memory_space<smem>>, %arg2: memref<2x64x128xf32, #tpu.memory_space<vmem>>, %arg3: memref<3x64x64xbf16, #tpu.memory_space<vmem>>, %arg4: memref<3x64x1xf32, #tpu.memory_space<vmem>>, %arg5: memref<3x64x64xbf16, #tpu.memory_space<vmem>>, %arg6: memref<3x64x1xf32, #tpu.memory_space<vmem>>, %arg7: memref<1x64xf32, #tpu.memory_space<vmem>>, %arg8: memref<1x64xbf16, #tpu.memory_space<vmem>>, %arg9: memref<1x256xf32, #tpu.memory_space<vmem>>, %arg10: memref<64x256xf32, #tpu.memory_space<vmem>>) attributes {dimension_semantics = [#tpu.dimension_semantics<parallel>], iteration_bounds = array<i64: 1>, scalar_prefetch = 0 : i64, scratch_operands = 1 : i64, tpu.core_type = #tpu.core_type<tc>, window_params = [{transform_indices = @transform_0, window_bounds = array<i64: 3>}, {transform_indices = @transform_1, window_bounds = array<i64: 2, 64, 128>}, {pipeline_mode = #tpu.pipeline_mode<synchronous>, transform_indices = @transform_2, window_bounds = array<i64: 3, 64, 64>}, {pipeline_mode = #tpu.pipeline_mode<synchronous>, transform_indices = @transform_3, window_bounds = array<i64: 3, 64, 1>}, {pipeline_mode = #tpu.pipeline_mode<synchronous>, transform_indices = @transform_4, window_bounds = array<i64: 3, 64, 64>}, {pipeline_mode = #tpu.pipeline_mode<synchronous>, transform_indices = @transform_5, window_bounds = array<i64: 3, 64, 1>}, {pipeline_mode = #tpu.pipeline_mode<synchronous>, transform_indices = @transform_6, window_bounds = array<i64: 1, 64>}, {pipeline_mode = #tpu.pipeline_mode<synchronous>, transform_indices = @transform_7, window_bounds = array<i64: 1, 64>}, {transform_indices = @transform_8, window_bounds = array<i64: 1, 256>}]} {
    %c0 = arith.constant 0 : index
    %c0_0 = arith.constant 0 : index
    %c0_1 = arith.constant 0 : index
    %0 = vector.load %arg2[%c0, %c0_0, %c0_1] : memref<2x64x128xf32, #tpu.memory_space<vmem>>, vector<1x64x128xf32>
    %1 = vector.shape_cast %0 : vector<1x64x128xf32> to vector<64x128xf32>
    %c0_2 = arith.constant 0 : index
    %c0_3 = arith.constant 0 : index
    %2 = vector.load %arg10[%c0_2, %c0_3] : memref<64x256xf32, #tpu.memory_space<vmem>>, vector<64x128xf32>
    tpu.vector_store %arg10[%c0_2, %c0_3], %1 {strides = array<i32>} : memref<64x256xf32, #tpu.memory_space<vmem>>, vector<64x128xf32>,
    %c1 = arith.constant 1 : index
    %c0_4 = arith.constant 0 : index
    %c0_5 = arith.constant 0 : index
    %3 = vector.load %arg2[%c1, %c0_4, %c0_5] : memref<2x64x128xf32, #tpu.memory_space<vmem>>, vector<1x64x128xf32>
    %4 = vector.shape_cast %3 : vector<1x64x128xf32> to vector<64x128xf32>
    %c0_6 = arith.constant 0 : index
    %c128 = arith.constant 128 : index
    %5 = vector.load %arg10[%c0_6, %c128] : memref<64x256xf32, #tpu.memory_space<vmem>>, vector<64x128xf32>
    tpu.vector_store %arg10[%c0_6, %c128], %4 {strides = array<i32>} : memref<64x256xf32, #tpu.memory_space<vmem>>, vector<64x128xf32>,
    %c0_7 = arith.constant 0 : index
    %c0_8 = arith.constant 0 : index
    %6 = vector.load %arg10[%c0_7, %c0_8] : memref<64x256xf32, #tpu.memory_space<vmem>>, vector<64x256xf32>
    %cst = arith.constant 2.000000e-01 : f32
    %7 = vector.broadcast %cst : f32 to vector<64x256xf32>
    %8 = arith.mulf %7, %6 : vector<64x256xf32>
    %9 = arith.maximumf %6, %8 : vector<64x256xf32>
    %10 = arith.truncf %9 : vector<64x256xf32> to vector<64x256xbf16>
    %c0_9 = arith.constant 0 : index
    %c0_10 = arith.constant 0 : index
    %c0_11 = arith.constant 0 : index
    %11 = vector.load %arg3[%c0_9, %c0_10, %c0_11] : memref<3x64x64xbf16, #tpu.memory_space<vmem>>, vector<1x64x64xbf16>
    %12 = vector.shape_cast %11 : vector<1x64x64xbf16> to vector<64x64xbf16>
    %cst_12 = arith.constant dense<0.000000e+00> : vector<64x256xf32>
    %13 = tpu.matmul %12, %10, %cst_12 {dimension_numbers = #tpu.dot_dimension_numbers<[1], [0], [0], [1], [0, 0, 1, 1], [], []>} : vector<64x64xbf16>, vector<64x256xbf16>, vector<64x256xf32> -> vector<64x256xf32>
    %c0_13 = arith.constant 0 : index
    %c0_14 = arith.constant 0 : index
    %c0_15 = arith.constant 0 : index
    %14 = vector.load %arg4[%c0_13, %c0_14, %c0_15] : memref<3x64x1xf32, #tpu.memory_space<vmem>>, vector<1x64x1xf32>
    %15 = vector.shape_cast %14 : vector<1x64x1xf32> to vector<64x1xf32>
    %16 = vector.broadcast %15 : vector<64x1xf32> to vector<64x256xf32>
    %17 = arith.addf %13, %16 : vector<64x256xf32>
    %cst_16 = arith.constant 2.000000e-01 : f32
    %18 = vector.broadcast %cst_16 : f32 to vector<64x256xf32>
    %19 = arith.mulf %18, %17 : vector<64x256xf32>
    %20 = arith.maximumf %17, %19 : vector<64x256xf32>
    %21 = arith.truncf %20 : vector<64x256xf32> to vector<64x256xbf16>
    %c0_17 = arith.constant 0 : index
    %c0_18 = arith.constant 0 : index
    %c0_19 = arith.constant 0 : index
    %22 = vector.load %arg5[%c0_17, %c0_18, %c0_19] : memref<3x64x64xbf16, #tpu.memory_space<vmem>>, vector<1x64x64xbf16>
    %23 = vector.shape_cast %22 : vector<1x64x64xbf16> to vector<64x64xbf16>
    %cst_20 = arith.constant dense<0.000000e+00> : vector<64x256xf32>
    %24 = tpu.matmul %23, %21, %cst_20 {dimension_numbers = #tpu.dot_dimension_numbers<[1], [0], [0], [1], [0, 0, 1, 1], [], []>} : vector<64x64xbf16>, vector<64x256xbf16>, vector<64x256xf32> -> vector<64x256xf32>
    %25 = arith.addf %6, %24 : vector<64x256xf32>
    %c0_21 = arith.constant 0 : index
    %c0_22 = arith.constant 0 : index
    %c0_23 = arith.constant 0 : index
    %26 = vector.load %arg6[%c0_21, %c0_22, %c0_23] : memref<3x64x1xf32, #tpu.memory_space<vmem>>, vector<1x64x1xf32>
    %27 = vector.shape_cast %26 : vector<1x64x1xf32> to vector<64x1xf32>
    %28 = vector.broadcast %27 : vector<64x1xf32> to vector<64x256xf32>
    %29 = arith.addf %25, %28 : vector<64x256xf32>
    %cst_24 = arith.constant 2.000000e-01 : f32
    %30 = vector.broadcast %cst_24 : f32 to vector<64x256xf32>
    %31 = arith.mulf %30, %29 : vector<64x256xf32>
    %32 = arith.maximumf %29, %31 : vector<64x256xf32>
    %33 = arith.truncf %32 : vector<64x256xf32> to vector<64x256xbf16>
    %c1_25 = arith.constant 1 : index
    %c0_26 = arith.constant 0 : index
    %c0_27 = arith.constant 0 : index
    %34 = vector.load %arg3[%c1_25, %c0_26, %c0_27] : memref<3x64x64xbf16, #tpu.memory_space<vmem>>, vector<1x64x64xbf16>
    %35 = vector.shape_cast %34 : vector<1x64x64xbf16> to vector<64x64xbf16>
    %cst_28 = arith.constant dense<0.000000e+00> : vector<64x256xf32>
    %36 = tpu.matmul %35, %33, %cst_28 {dimension_numbers = #tpu.dot_dimension_numbers<[1], [0], [0], [1], [0, 0, 1, 1], [], []>} : vector<64x64xbf16>, vector<64x256xbf16>, vector<64x256xf32> -> vector<64x256xf32>
    %c1_29 = arith.constant 1 : index
    %c0_30 = arith.constant 0 : index
    %c0_31 = arith.constant 0 : index
    %37 = vector.load %arg4[%c1_29, %c0_30, %c0_31] : memref<3x64x1xf32, #tpu.memory_space<vmem>>, vector<1x64x1xf32>
    %38 = vector.shape_cast %37 : vector<1x64x1xf32> to vector<64x1xf32>
    %39 = vector.broadcast %38 : vector<64x1xf32> to vector<64x256xf32>
    %40 = arith.addf %36, %39 : vector<64x256xf32>
    %cst_32 = arith.constant 2.000000e-01 : f32
    %41 = vector.broadcast %cst_32 : f32 to vector<64x256xf32>
    %42 = arith.mulf %41, %40 : vector<64x256xf32>
    %43 = arith.maximumf %40, %42 : vector<64x256xf32>
    %44 = arith.truncf %43 : vector<64x256xf32> to vector<64x256xbf16>
    %c1_33 = arith.constant 1 : index
    %c0_34 = arith.constant 0 : index
    %c0_35 = arith.constant 0 : index
    %45 = vector.load %arg5[%c1_33, %c0_34, %c0_35] : memref<3x64x64xbf16, #tpu.memory_space<vmem>>, vector<1x64x64xbf16>
    %46 = vector.shape_cast %45 : vector<1x64x64xbf16> to vector<64x64xbf16>
    %cst_36 = arith.constant dense<0.000000e+00> : vector<64x256xf32>
    %47 = tpu.matmul %46, %44, %cst_36 {dimension_numbers = #tpu.dot_dimension_numbers<[1], [0], [0], [1], [0, 0, 1, 1], [], []>} : vector<64x64xbf16>, vector<64x256xbf16>, vector<64x256xf32> -> vector<64x256xf32>
    %48 = arith.addf %29, %47 : vector<64x256xf32>
    %c1_37 = arith.constant 1 : index
    %c0_38 = arith.constant 0 : index
    %c0_39 = arith.constant 0 : index
    %49 = vector.load %arg6[%c1_37, %c0_38, %c0_39] : memref<3x64x1xf32, #tpu.memory_space<vmem>>, vector<1x64x1xf32>
    %50 = vector.shape_cast %49 : vector<1x64x1xf32> to vector<64x1xf32>
    %51 = vector.broadcast %50 : vector<64x1xf32> to vector<64x256xf32>
    %52 = arith.addf %48, %51 : vector<64x256xf32>
    %cst_40 = arith.constant 2.000000e-01 : f32
    %53 = vector.broadcast %cst_40 : f32 to vector<64x256xf32>
    %54 = arith.mulf %53, %52 : vector<64x256xf32>
    %55 = arith.maximumf %52, %54 : vector<64x256xf32>
    %56 = arith.truncf %55 : vector<64x256xf32> to vector<64x256xbf16>
    %c2 = arith.constant 2 : index
    %c0_41 = arith.constant 0 : index
    %c0_42 = arith.constant 0 : index
    %57 = vector.load %arg3[%c2, %c0_41, %c0_42] : memref<3x64x64xbf16, #tpu.memory_space<vmem>>, vector<1x64x64xbf16>
    %58 = vector.shape_cast %57 : vector<1x64x64xbf16> to vector<64x64xbf16>
    %cst_43 = arith.constant dense<0.000000e+00> : vector<64x256xf32>
    %59 = tpu.matmul %58, %56, %cst_43 {dimension_numbers = #tpu.dot_dimension_numbers<[1], [0], [0], [1], [0, 0, 1, 1], [], []>} : vector<64x64xbf16>, vector<64x256xbf16>, vector<64x256xf32> -> vector<64x256xf32>
    %c2_44 = arith.constant 2 : index
    %c0_45 = arith.constant 0 : index
    %c0_46 = arith.constant 0 : index
    %60 = vector.load %arg4[%c2_44, %c0_45, %c0_46] : memref<3x64x1xf32, #tpu.memory_space<vmem>>, vector<1x64x1xf32>
    %61 = vector.shape_cast %60 : vector<1x64x1xf32> to vector<64x1xf32>
    %62 = vector.broadcast %61 : vector<64x1xf32> to vector<64x256xf32>
    %63 = arith.addf %59, %62 : vector<64x256xf32>
    %cst_47 = arith.constant 2.000000e-01 : f32
    %64 = vector.broadcast %cst_47 : f32 to vector<64x256xf32>
    %65 = arith.mulf %64, %63 : vector<64x256xf32>
    %66 = arith.maximumf %63, %65 : vector<64x256xf32>
    %67 = arith.truncf %66 : vector<64x256xf32> to vector<64x256xbf16>
    %c2_48 = arith.constant 2 : index
    %c0_49 = arith.constant 0 : index
    %c0_50 = arith.constant 0 : index
    %68 = vector.load %arg5[%c2_48, %c0_49, %c0_50] : memref<3x64x64xbf16, #tpu.memory_space<vmem>>, vector<1x64x64xbf16>
    %69 = vector.shape_cast %68 : vector<1x64x64xbf16> to vector<64x64xbf16>
    %cst_51 = arith.constant dense<0.000000e+00> : vector<64x256xf32>
    %70 = tpu.matmul %69, %67, %cst_51 {dimension_numbers = #tpu.dot_dimension_numbers<[1], [0], [0], [1], [0, 0, 1, 1], [], []>} : vector<64x64xbf16>, vector<64x256xbf16>, vector<64x256xf32> -> vector<64x256xf32>
    %71 = arith.addf %52, %70 : vector<64x256xf32>
    %c2_52 = arith.constant 2 : index
    %c0_53 = arith.constant 0 : index
    %c0_54 = arith.constant 0 : index
    %72 = vector.load %arg6[%c2_52, %c0_53, %c0_54] : memref<3x64x1xf32, #tpu.memory_space<vmem>>, vector<1x64x1xf32>
    %73 = vector.shape_cast %72 : vector<1x64x1xf32> to vector<64x1xf32>
    %74 = vector.broadcast %73 : vector<64x1xf32> to vector<64x256xf32>
    %75 = arith.addf %71, %74 : vector<64x256xf32>
    %c0_55 = arith.constant 0 : index
    %c0_56 = arith.constant 0 : index
    %76 = vector.load %arg7[%c0_55, %c0_56] : memref<1x64xf32, #tpu.memory_space<vmem>>, vector<1x64xf32>
    %cst_57 = arith.constant dense<0.000000e+00> : vector<1x256xf32>
    %77 = tpu.matmul %76, %75, %cst_57 {dimension_numbers = #tpu.dot_dimension_numbers<[1], [0], [0], [1], [0, 0, 1, 1], [], []>} : vector<1x64xf32>, vector<64x256xf32>, vector<1x256xf32> -> vector<1x256xf32>
    %cst_58 = arith.constant 2.000000e-01 : f32
    %78 = vector.broadcast %cst_58 : f32 to vector<64x256xf32>
    %79 = arith.mulf %78, %75 : vector<64x256xf32>
    %80 = arith.maximumf %75, %79 : vector<64x256xf32>
    %81 = arith.truncf %80 : vector<64x256xf32> to vector<64x256xbf16>
    %c0_59 = arith.constant 0 : index
    %c0_60 = arith.constant 0 : index
    %82 = vector.load %arg8[%c0_59, %c0_60] : memref<1x64xbf16, #tpu.memory_space<vmem>>, vector<1x64xbf16>
    %cst_61 = arith.constant dense<0.000000e+00> : vector<1x256xf32>
    %83 = tpu.matmul %82, %81, %cst_61 {dimension_numbers = #tpu.dot_dimension_numbers<[1], [0], [0], [1], [0, 0, 1, 1], [], []>} : vector<1x64xbf16>, vector<64x256xbf16>, vector<1x256xf32> -> vector<1x256xf32>
    %c0_62 = arith.constant 0 : index
    %84 = memref.load %arg1[%c0_62] : memref<3xf32, #tpu.memory_space<smem>>
    %85 = vector.broadcast %84 : f32 to vector<1x256xf32>
    %86 = arith.addf %83, %85 : vector<1x256xf32>
    %c1_63 = arith.constant 1 : index
    %87 = memref.load %arg1[%c1_63] : memref<3xf32, #tpu.memory_space<smem>>
    %cst_64 = arith.constant 2.000000e-01 : f32
    %88 = vector.broadcast %cst_64 : f32 to vector<1x256xf32>
    %89 = arith.mulf %88, %86 : vector<1x256xf32>
    %90 = arith.maximumf %86, %89 : vector<1x256xf32>
    %91 = vector.broadcast %87 : f32 to vector<1x256xf32>
    %92 = arith.mulf %91, %90 : vector<1x256xf32>
    %93 = arith.addf %77, %92 : vector<1x256xf32>
    %c2_65 = arith.constant 2 : index
    %94 = memref.load %arg1[%c2_65] : memref<3xf32, #tpu.memory_space<smem>>
    %95 = vector.broadcast %94 : f32 to vector<1x256xf32>
    %96 = arith.addf %93, %95 : vector<1x256xf32>
    %c0_66 = arith.constant 0 : index
    %c0_67 = arith.constant 0 : index
    %97 = vector.load %arg9[%c0_66, %c0_67] : memref<1x256xf32, #tpu.memory_space<vmem>>, vector<1x256xf32>
    tpu.vector_store %arg9[%c0_66, %c0_67], %96 {strides = array<i32>} : memref<1x256xf32, #tpu.memory_space<vmem>>, vector<1x256xf32>,
    return
  }
  func.func @transform_0(%arg0: i32) -> i32 {
    %c0_i32 = arith.constant 0 : i32
    %c0_i32_0 = arith.constant 0 : i32
    return %c0_i32 : i32
  }
  func.func @transform_1(%arg0: i32) -> (i32, i32, i32) {
    %c0_i32 = arith.constant 0 : i32
    %c0_i32_0 = arith.constant 0 : i32
    %c0_i32_1 = arith.constant 0 : i32
    return %arg0, %c0_i32, %c0_i32_0 : i32, i32, i32
  }
  func.func @transform_2(%arg0: i32) -> (i32, i32, i32) {
    %c0_i32 = arith.constant 0 : i32
    %c0_i32_0 = arith.constant 0 : i32
    %c0_i32_1 = arith.constant 0 : i32
    %c0_i32_2 = arith.constant 0 : i32
    return %c0_i32, %c0_i32_0, %c0_i32_1 : i32, i32, i32
  }
  func.func @transform_3(%arg0: i32) -> (i32, i32, i32) {
    %c0_i32 = arith.constant 0 : i32
    %c0_i32_0 = arith.constant 0 : i32
    %c0_i32_1 = arith.constant 0 : i32
    %c0_i32_2 = arith.constant 0 : i32
    return %c0_i32, %c0_i32_0, %c0_i32_1 : i32, i32, i32
  }
  func.func @transform_4(%arg0: i32) -> (i32, i32, i32) {
    %c0_i32 = arith.constant 0 : i32
    %c0_i32_0 = arith.constant 0 : i32
    %c0_i32_1 = arith.constant 0 : i32
    %c0_i32_2 = arith.constant 0 : i32
    return %c0_i32, %c0_i32_0, %c0_i32_1 : i32, i32, i32
  }
  func.func @transform_5(%arg0: i32) -> (i32, i32, i32) {
    %c0_i32 = arith.constant 0 : i32
    %c0_i32_0 = arith.constant 0 : i32
    %c0_i32_1 = arith.constant 0 : i32
    %c0_i32_2 = arith.constant 0 : i32
    return %c0_i32, %c0_i32_0, %c0_i32_1 : i32, i32, i32
  }
  func.func @transform_6(%arg0: i32) -> (i32, i32) {
    %c0_i32 = arith.constant 0 : i32
    %c0_i32_0 = arith.constant 0 : i32
    %c0_i32_1 = arith.constant 0 : i32
    return %c0_i32, %c0_i32_0 : i32, i32
  }
  func.func @transform_7(%arg0: i32) -> (i32, i32) {
    %c0_i32 = arith.constant 0 : i32
    %c0_i32_0 = arith.constant 0 : i32
    %c0_i32_1 = arith.constant 0 : i32
    return %c0_i32, %c0_i32_0 : i32, i32
  }
  func.func @transform_8(%arg0: i32) -> (i32, i32) {
    %c0_i32 = arith.constant 0 : i32
    %c0_i32_0 = arith.constant 0 : i32
    return %c0_i32, %arg0 : i32, i32
  }
}

</mosaic_0001>

<llo_original>
// kernel: letter_decoder.1
$region0: #{letter_decoder.1}
  #allocation0 [shape = 'u32[]', space=smem, size = 0x4, offset = 0x4, fixed_abs, tag = 'smem constant byte address 0x4 - core index']
  #allocation1 [shape = 'u32[144,128]{1,0:T(1,128)}', space=vmem, size = 0x12000, scoped, tag = 'internal scratch']
  #allocation2 [shape = 'f32[64,256]{1,0:T(8,128)}', space=vmem, size = 0x10000, scoped, tag = 'scratch operand']
  %s0 = inlined_call_operand.vmem [shape: f32[3], index: 0, kind: input, shape index: {}]
  %s1 = inlined_call_operand.vmem [shape: f32[2,64,128], index: 1, kind: input, shape index: {}]
  %s2 = inlined_call_operand.vmem [shape: bf16[3,64,64], index: 2, kind: input, shape index: {}]
  %s3 = inlined_call_operand.vmem [shape: f32[3,64,1], index: 3, kind: input, shape index: {}]
  %s4 = inlined_call_operand.vmem [shape: bf16[3,64,64], index: 4, kind: input, shape index: {}]
  %s5 = inlined_call_operand.vmem [shape: f32[3,64,1], index: 5, kind: input, shape index: {}]
  %s6 = inlined_call_operand.vmem [shape: f32[1,64], index: 6, kind: input, shape index: {}]
  %s7 = inlined_call_operand.vmem [shape: bf16[1,64], index: 7, kind: input, shape index: {}]
  %s8 = inlined_call_operand.hbm [shape: f32[1,256], index: 8, kind: output, shape index: {}]
  %s9 = sld [smem:[#allocation0]]
  $region46: #{letter_decoder.1} parent=0
    _
  %s11 = ssub.s32 1, %s9
  %s12 = scalar_select 0, %s11, %s9
  $region1: #{letter_decoder.1} parent=0
    #allocation3 [shape = 'u8[512]{0}', space=smem, size = 0x200, scoped, tag = 'input window, operand 0, single buffered']
    #allocation4 [shape = 's32[1]{0}', space=sflag, size = 0x4, scoped, tag = 'scoped memory for letter_decoder.1']
    #allocation5 [shape = 's32[1]{0}', space=sflag, size = 0x4, scoped, tag = 'scoped memory for letter_decoder.1']
    #allocation6 [shape = 'u8[1024]{0}', space=vmem, size = 0x400, scoped, tag = 'output window, operand 0, single buffered']
    %13 = vsyncpa [#allocation5], 0
    %14 = vsyncpa [#allocation4], 0
    // Predicated region
    $region2: #{letter_decoder.1} parent=1 // pred_check
      _
    $region3: #{letter_decoder.1} parent=1 // pred_check_branch
      %16 = sbr.rel (0) target = $region5
    $region4: #{letter_decoder.1} parent=1 // pred_region
      %s18 = ssub.s32 16, 16
      %19 = vsyncadd [#allocation5], %s18
      %s21 = sshll.u32 %s0, 4
      %s22 = int_to_ptr.vmem [resolvable:$true] %s21
      %24 = dma.vmem_to_smem %s22, 16, [#allocation3], [#allocation5]
    $region5: #{letter_decoder.1} parent=1 // pred_fallthru
      _
    // Predicated region
    $region6: #{letter_decoder.1} parent=1 // pred_check
      _
    $region7: #{letter_decoder.1} parent=1 // pred_check_branch
      %26 = sbr.rel (0) target = $region9
    $region8: #{letter_decoder.1} parent=1 // pred_region
      _
    $region9: #{letter_decoder.1} parent=1 // pred_fallthru
      _
    // Predicated region
    $region10: #{letter_decoder.1} parent=1 // pred_check
      _
    $region11: #{letter_decoder.1} parent=1 // pred_check_branch
      %28 = sbr.rel (0) target = $region13
    $region12: #{letter_decoder.1} parent=1 // pred_region
      _
    $region13: #{letter_decoder.1} parent=1 // pred_fallthru
      _
    // Predicated region
    $region14: #{letter_decoder.1} parent=1 // pred_check
      _
    $region15: #{letter_decoder.1} parent=1 // pred_check_branch
      %30 = sbr.rel (0) target = $region17
    $region16: #{letter_decoder.1} parent=1 // pred_region
      _
    $region17: #{letter_decoder.1} parent=1 // pred_fallthru
      _
    // Predicated region
    $region18: #{letter_decoder.1} parent=1 // pred_check
      _
    $region19: #{letter_decoder.1} parent=1 // pred_check_branch
      %32 = sbr.rel (0) target = $region21
    $region20: #{letter_decoder.1} parent=1 // pred_region
      _
    $region21: #{letter_decoder.1} parent=1 // pred_fallthru
      _
    // Predicated region
    $region22: #{letter_decoder.1} parent=1 // pred_check
      _
    $region23: #{letter_decoder.1} parent=1 // pred_check_branch
      %34 = sbr.rel (0) target = $region25
    $region24: #{letter_decoder.1} parent=1 // pred_region
      _
    $region25: #{letter_decoder.1} parent=1 // pred_fallthru
      _
    // Predicated region
    $region26: #{letter_decoder.1} parent=1 // pred_check
      _
    $region27: #{letter_decoder.1} parent=1 // pred_check_branch
      %36 = sbr.rel (0) target = $region29
    $region28: #{letter_decoder.1} parent=1 // pred_region
      _
    $region29: #{letter_decoder.1} parent=1 // pred_fallthru
      _
    // Predicated region
    $region30: #{letter_decoder.1} parent=1 // pred_check
      _
    $region31: #{letter_decoder.1} parent=1 // pred_check_branch
      %38 = sbr.rel (0) target = $region33
    $region32: #{letter_decoder.1} parent=1 // pred_region
      _
    $region33: #{letter_decoder.1} parent=1 // pred_fallthru
      _
    // Predicated region
    $region34: #{letter_decoder.1} parent=1 // pred_check
      _
    $region35: #{letter_decoder.1} parent=1 // pred_check_branch
      %40 = sbr.rel (0) target = $region37
    $region36: #{letter_decoder.1} parent=1 // pred_region
      %41 = dma.done [#allocation5], 16
    $region37: #{letter_decoder.1} parent=1 // pred_fallthru
      _
    %42 = sfence
    %v44 = vld [vmem:[%s1] sm:$0xff]
    %v45 = vld [vmem:[%s1 + $0x8] sm:$0xff]
    %v46 = vld [vmem:[%s1 + $0x10] sm:$0xff]
    %v47 = vld [vmem:[%s1 + $0x18] sm:$0xff]
    %v48 = vld [vmem:[%s1 + $0x20] sm:$0xff]
    %v49 = vld [vmem:[%s1 + $0x28] sm:$0xff]
    %v50 = vld [vmem:[%s1 + $0x30] sm:$0xff]
    %v51 = vld [vmem:[%s1 + $0x38] sm:$0xff]
    %52 = vst [vmem:[#allocation2] sm:$0xff] %v44
    %53 = vst [vmem:[#allocation2 + $0x10] sm:$0xff] %v45
    %54 = vst [vmem:[#allocation2 + $0x20] sm:$0xff] %v46
    %55 = vst [vmem:[#allocation2 + $0x30] sm:$0xff] %v47
    %56 = vst [vmem:[#allocation2 + $0x40] sm:$0xff] %v48
    %57 = vst [vmem:[#allocation2 + $0x50] sm:$0xff] %v49
    %58 = vst [vmem:[#allocation2 + $0x60] sm:$0xff] %v50
    %59 = vst [vmem:[#allocation2 + $0x70] sm:$0xff] %v51
    %s60 = scalar_lea.vmem %s1, 64
    %v61 = vld [vmem:[%s60] sm:$0xff]
    %v62 = vld [vmem:[%s60 + $0x8] sm:$0xff]
    %v63 = vld [vmem:[%s60 + $0x10] sm:$0xff]
    %v64 = vld [vmem:[%s60 + $0x18] sm:$0xff]
    %v65 = vld [vmem:[%s60 + $0x20] sm:$0xff]
    %v66 = vld [vmem:[%s60 + $0x28] sm:$0xff]
    %v67 = vld [vmem:[%s60 + $0x30] sm:$0xff]
    %v68 = vld [vmem:[%s60 + $0x38] sm:$0xff]
    %69 = vst [vmem:[#allocation2 + $0x8] sm:$0xff] %v61
    %70 = vst [vmem:[#allocation2 + $0x18] sm:$0xff] %v62
    %71 = vst [vmem:[#allocation2 + $0x28] sm:$0xff] %v63
    %72 = vst [vmem:[#allocation2 + $0x38] sm:$0xff] %v64
    %73 = vst [vmem:[#allocation2 + $0x48] sm:$0xff] %v65
    %74 = vst [vmem:[#allocation2 + $0x58] sm:$0xff] %v66
    %75 = vst [vmem:[#allocation2 + $0x68] sm:$0xff] %v67
    %76 = vst [vmem:[#allocation2 + $0x78] sm:$0xff] %v68
    %v77 = vld [vmem:[#allocation2] sm:$0xff]
    %v78 = vld [vmem:[#allocation2 + $0x8] sm:$0xff]
    %v79 = vld [vmem:[#allocation2 + $0x10] sm:$0xff]
    %v80 = vld [vmem:[#allocation2 + $0x18] sm:$0xff]
    %v81 = vld [vmem:[#allocation2 + $0x20] sm:$0xff]
    %v82 = vld [vmem:[#allocation2 + $0x28] sm:$0xff]
    %v83 = vld [vmem:[#allocation2 + $0x30] sm:$0xff]
    %v84 = vld [vmem:[#allocation2 + $0x38] sm:$0xff]
    %v85 = vld [vmem:[#allocation2 + $0x40] sm:$0xff]
    %v86 = vld [vmem:[#allocation2 + $0x48] sm:$0xff]
    %v87 = vld [vmem:[#allocation2 + $0x50] sm:$0xff]
    %v88 = vld [vmem:[#allocation2 + $0x58] sm:$0xff]
    %v89 = vld [vmem:[#allocation2 + $0x60] sm:$0xff]
    %v90 = vld [vmem:[#allocation2 + $0x68] sm:$0xff]
    %v91 = vld [vmem:[#allocation2 + $0x70] sm:$0xff]
    %v92 = vld [vmem:[#allocation2 + $0x78] sm:$0xff]
    %v93 = vmul.f32 %v77, 0.2
    %v94 = vmul.f32 %v78, 0.2
    %v95 = vmul.f32 %v79, 0.2
    %v96 = vmul.f32 %v80, 0.2
    %v97 = vmul.f32 %v81, 0.2
    %v98 = vmul.f32 %v82, 0.2
    %v99 = vmul.f32 %v83, 0.2
    %v100 = vmul.f32 %v84, 0.2
    %v101 = vmul.f32 %v85, 0.2
    %v102 = vmul.f32 %v86, 0.2
    %v103 = vmul.f32 %v87, 0.2
    %v104 = vmul.f32 %v88, 0.2
    %v105 = vmul.f32 %v89, 0.2
    %v106 = vmul.f32 %v90, 0.2
    %v107 = vmul.f32 %v91, 0.2
    %v108 = vmul.f32 %v92, 0.2
    %v109 = vmax.f32 %v77, %v93
    %v110 = vmax.f32 %v78, %v94
    %v111 = vmax.f32 %v79, %v95
    %v112 = vmax.f32 %v80, %v96
    %v113 = vmax.f32 %v81, %v97
    %v114 = vmax.f32 %v82, %v98
    %v115 = vmax.f32 %v83, %v99
    %v116 = vmax.f32 %v84, %v100
    %v117 = vmax.f32 %v85, %v101
    %v118 = vmax.f32 %v86, %v102
    %v119 = vmax.f32 %v87, %v103
    %v120 = vmax.f32 %v88, %v104
    %v121 = vmax.f32 %v89, %v105
    %v122 = vmax.f32 %v90, %v106
    %v123 = vmax.f32 %v91, %v107
    %v124 = vmax.f32 %v92, %v108
    %v125 = vpack.c.bf16 %v111, %v109
    %v126 = vpack.c.bf16 %v112, %v110
    %v127 = vpack.c.bf16 %v115, %v113
    %v128 = vpack.c.bf16 %v116, %v114
    %v129 = vpack.c.bf16 %v119, %v117
    %v130 = vpack.c.bf16 %v120, %v118
    %v131 = vpack.c.bf16 %v123, %v121
    %v132 = vpack.c.bf16 %v124, %v122
    %v133 = vld [vmem:[%s2] sm:$0xf]
    %v134 = vld [vmem:[%s2 + $0x4] sm:$0xf]
    %v135 = vld [vmem:[%s2 + $0x8] sm:$0xf]
    %v136 = vld [vmem:[%s2 + $0xc] sm:$0xf]
    %v137 = vld [vmem:[%s2 + $0x10] sm:$0xf]
    %v138 = vld [vmem:[%s2 + $0x14] sm:$0xf]
    %v139 = vld [vmem:[%s2 + $0x18] sm:$0xf]
    %v140 = vld [vmem:[%s2 + $0x1c] sm:$0xf]
    %v141 = vld [vmem:[%s3] sm:$0xff]
    %v142 = vld [vmem:[%s3 + $0x8] sm:$0xff]
    %v143 = vld [vmem:[%s3 + $0x10] sm:$0xff]
    %v144 = vld [vmem:[%s3 + $0x18] sm:$0xff]
    %v145 = vld [vmem:[%s3 + $0x20] sm:$0xff]
    %v146 = vld [vmem:[%s3 + $0x28] sm:$0xff]
    %v147 = vld [vmem:[%s3 + $0x30] sm:$0xff]
    %v148 = vld [vmem:[%s3 + $0x38] sm:$0xff]
    %150 = vset.pattern.permute.xlu0 0
    %151 = vperm.xlu0 %150, %v141
    %v152 = vpop.permute.xlu0 %151
    %155 = vset.pattern.permute.xlu0 0
    %156 = vperm.xlu0 %155, %v142
    %v157 = vpop.permute.xlu0 %156
    %160 = vset.pattern.permute.xlu0 0
    %161 = vperm.xlu0 %160, %v143
    %v162 = vpop.permute.xlu0 %161
    %165 = vset.pattern.permute.xlu0 0
    %166 = vperm.xlu0 %165, %v144
    %v167 = vpop.permute.xlu0 %166
    %170 = vset.pattern.permute.xlu0 0
    %171 = vperm.xlu0 %170, %v145
    %v172 = vpop.permute.xlu0 %171
    %175 = vset.pattern.permute.xlu0 0
    %176 = vperm.xlu0 %175, %v146
    %v177 = vpop.permute.xlu0 %176
    %180 = vset.pattern.permute.xlu0 0
    %181 = vperm.xlu0 %180, %v147
    %v182 = vpop.permute.xlu0 %181
    %185 = vset.pattern.permute.xlu0 0
    %186 = vperm.xlu0 %185, %v148
    %v187 = vpop.permute.xlu0 %186
    %v197 = vunpack.c.l.b16 %v133
    %v198 = vunpack.c.l.b16 %v134
    %v199 = vunpack.c.l.b16 %v135
    %v200 = vunpack.c.l.b16 %v136
    %v201 = vunpack.c.l.b16 %v137
    %v202 = vunpack.c.l.b16 %v138
    %v203 = vunpack.c.l.b16 %v139
    %v204 = vunpack.c.l.b16 %v140
    %v205 = vpack.c.b16 %v198, %v197
    %v206 = vpack.c.b16 %v200, %v199
    %v207 = vpack.c.b16 %v202, %v201
    %v208 = vpack.c.b16 %v204, %v203
    %vm209 = vcmask 523264
    %v211 = vsel %vm209, %v205, 0
    %v214 = vsel %vm209, %v206, 0
    %v217 = vsel %vm209, %v207, 0
    %v220 = vsel %vm209, %v208, 0
    %222 = vmatprep.subr.bf16.mxu0 0
    %223 = vmatpush1.bf16.msra.mxu0 0
    %224 = vmatprep.subr.bf16.mxu0 0
    %225 = vmatpush1.bf16.msra.mxu0 0
    %226 = vmatprep.subr.bf16.mxu0 0
    %227 = vmatpush1.bf16.msra.mxu0 0
    %228 = vmatprep.subr.bf16.mxu0 0
    %229 = vmatpush1.bf16.msra.mxu0 0
    %230 = vmatprep.subr.bf16.mxu0 %v132
    %231 = vmatpush1.bf16.msra.mxu0 %v131
    %232 = vmatprep.subr.bf16.mxu0 %v130
    %233 = vmatpush1.bf16.msra.mxu0 %v129
    %234 = vmatprep.subr.bf16.mxu0 %v128
    %235 = vmatpush1.bf16.msra.mxu0 %v127
    %236 = vmatprep.subr.bf16.mxu0 %v126
    %237 = vmatpush1.bf16.msra.mxu0 %v125
    %238 = vmatprep.subr.bf16.mxu0 0
    %239 = vmatpush2.bf16.msra.mxu0 0
    %240 = vmatprep.subr.bf16.mxu0 0
    %241 = vmatpush2.bf16.msra.mxu0 0
    %242 = vmatprep.subr.bf16.mxu0 0
    %243 = vmatpush2.bf16.msra.mxu0 0
    %244 = vmatprep.subr.bf16.mxu0 0
    %245 = vmatpush2.bf16.msra.mxu0 0
    %246 = vmatprep.subr.bf16.mxu0 0
    %247 = vmatpush2.bf16.msra.mxu0 0
    %248 = vmatprep.subr.bf16.mxu0 0
    %249 = vmatpush2.bf16.msra.mxu0 0
    %250 = vmatprep.subr.bf16.mxu0 0
    %251 = vmatpush2.bf16.msra.mxu0 0
    %252 = vmatprep.subr.bf16.mxu0 0
    %253 = vmatpush2.bf16.msra.mxu0 0
    %254 = vmatprep.mubr.bf16.mxu0 0
    %255 = vmatmul.mubr.bf16.gmra.mxu0 %v211
    %v256 = vpop.f32.mrf.mxu0
    %v257 = vadd.f32 %v152, %v256
    %v258 = vpop.f32.mrf.mxu0
    %v259 = vadd.f32 %v152, %v258
    %v260 = vpop.f32.mrf.mxu0
    %v261 = vadd.f32 %v157, %v260
    %v262 = vpop.f32.mrf.mxu0
    %v263 = vadd.f32 %v157, %v262
    %264 = vmatprep.mubr.bf16.mxu0 0
    %265 = vmatmul.mubr.bf16.gmra.mxu0 %v214
    %v266 = vpop.f32.mrf.mxu0
    %v267 = vadd.f32 %v162, %v266
    %v268 = vpop.f32.mrf.mxu0
    %v269 = vadd.f32 %v162, %v268
    %v270 = vpop.f32.mrf.mxu0
    %v271 = vadd.f32 %v167, %v270
    %v272 = vpop.f32.mrf.mxu0
    %v273 = vadd.f32 %v167, %v272
    %274 = vmatprep.mubr.bf16.mxu0 0
    %275 = vmatmul.mubr.bf16.gmra.mxu0 %v217
    %v276 = vpop.f32.mrf.mxu0
    %v277 = vadd.f32 %v172, %v276
    %v278 = vpop.f32.mrf.mxu0
    %v279 = vadd.f32 %v172, %v278
    %v280 = vpop.f32.mrf.mxu0
    %v281 = vadd.f32 %v177, %v280
    %v282 = vpop.f32.mrf.mxu0
    %v283 = vadd.f32 %v177, %v282
    %284 = vmatprep.mubr.bf16.mxu0 0
    %285 = vmatmul.mubr.bf16.gmra.mxu0 %v220
    %v286 = vpop.f32.mrf.mxu0
    %v287 = vadd.f32 %v182, %v286
    %v288 = vpop.f32.mrf.mxu0
    %v289 = vadd.f32 %v182, %v288
    %v290 = vpop.f32.mrf.mxu0
    %v291 = vadd.f32 %v187, %v290
    %v292 = vpop.f32.mrf.mxu0
    %v293 = vadd.f32 %v187, %v292
    %294 = vdwg.mxu0
    %v295 = vmul.f32 %v257, 0.2
    %v296 = vmul.f32 %v259, 0.2
    %v297 = vmul.f32 %v261, 0.2
    %v298 = vmul.f32 %v263, 0.2
    %v299 = vmul.f32 %v267, 0.2
    %v300 = vmul.f32 %v269, 0.2
    %v301 = vmul.f32 %v271, 0.2
    %v302 = vmul.f32 %v273, 0.2
    %v303 = vmul.f32 %v277, 0.2
    %v304 = vmul.f32 %v279, 0.2
    %v305 = vmul.f32 %v281, 0.2
    %v306 = vmul.f32 %v283, 0.2
    %v307 = vmul.f32 %v287, 0.2
    %v308 = vmul.f32 %v289, 0.2
    %v309 = vmul.f32 %v291, 0.2
    %v310 = vmul.f32 %v293, 0.2
    %v311 = vmax.f32 %v257, %v295
    %v312 = vmax.f32 %v259, %v296
    %v313 = vmax.f32 %v261, %v297
    %v314 = vmax.f32 %v263, %v298
    %v315 = vmax.f32 %v267, %v299
    %v316 = vmax.f32 %v269, %v300
    %v317 = vmax.f32 %v271, %v301
    %v318 = vmax.f32 %v273, %v302
    %v319 = vmax.f32 %v277, %v303
    %v320 = vmax.f32 %v279, %v304
    %v321 = vmax.f32 %v281, %v305
    %v322 = vmax.f32 %v283, %v306
    %v323 = vmax.f32 %v287, %v307
    %v324 = vmax.f32 %v289, %v308
    %v325 = vmax.f32 %v291, %v309
    %v326 = vmax.f32 %v293, %v310
    %v327 = vpack.c.bf16 %v313, %v311
    %v328 = vpack.c.bf16 %v314, %v312
    %v329 = vpack.c.bf16 %v317, %v315
    %v330 = vpack.c.bf16 %v318, %v316
    %v331 = vpack.c.bf16 %v321, %v319
    %v332 = vpack.c.bf16 %v322, %v320
    %v333 = vpack.c.bf16 %v325, %v323
    %v334 = vpack.c.bf16 %v326, %v324
    %v335 = vld [vmem:[%s4] sm:$0xf]
    %v336 = vld [vmem:[%s4 + $0x4] sm:$0xf]
    %v337 = vld [vmem:[%s4 + $0x8] sm:$0xf]
    %v338 = vld [vmem:[%s4 + $0xc] sm:$0xf]
    %v339 = vld [vmem:[%s4 + $0x10] sm:$0xf]
    %v340 = vld [vmem:[%s4 + $0x14] sm:$0xf]
    %v341 = vld [vmem:[%s4 + $0x18] sm:$0xf]
    %v342 = vld [vmem:[%s4 + $0x1c] sm:$0xf]
    %v351 = vunpack.c.l.b16 %v335
    %v352 = vunpack.c.l.b16 %v336
    %v353 = vunpack.c.l.b16 %v337
    %v354 = vunpack.c.l.b16 %v338
    %v355 = vunpack.c.l.b16 %v339
    %v356 = vunpack.c.l.b16 %v340
    %v357 = vunpack.c.l.b16 %v341
    %v358 = vunpack.c.l.b16 %v342
    %v359 = vpack.c.b16 %v352, %v351
    %v360 = vpack.c.b16 %v354, %v353
    %v361 = vpack.c.b16 %v356, %v355
    %v362 = vpack.c.b16 %v358, %v357
    %v364 = vsel %vm209, %v359, 0
    %v367 = vsel %vm209, %v360, 0
    %v370 = vsel %vm209, %v361, 0
    %v373 = vsel %vm209, %v362, 0
    %375 = vmatprep.subr.bf16.mxu0 0
    %376 = vmatpush1.bf16.msra.mxu0 0
    %377 = vmatprep.subr.bf16.mxu0 0
    %378 = vmatpush1.bf16.msra.mxu0 0
    %379 = vmatprep.subr.bf16.mxu0 0
    %380 = vmatpush1.bf16.msra.mxu0 0
    %381 = vmatprep.subr.bf16.mxu0 0
    %382 = vmatpush1.bf16.msra.mxu0 0
    %383 = vmatprep.subr.bf16.mxu0 %v334
    %384 = vmatpush1.bf16.msra.mxu0 %v333
    %385 = vmatprep.subr.bf16.mxu0 %v332
    %386 = vmatpush1.bf16.msra.mxu0 %v331
    %387 = vmatprep.subr.bf16.mxu0 %v330
    %388 = vmatpush1.bf16.msra.mxu0 %v329
    %389 = vmatprep.subr.bf16.mxu0 %v328
    %390 = vmatpush1.bf16.msra.mxu0 %v327
    %391 = vmatprep.subr.bf16.mxu0 0
    %392 = vmatpush2.bf16.msra.mxu0 0
    %393 = vmatprep.subr.bf16.mxu0 0
    %394 = vmatpush2.bf16.msra.mxu0 0
    %395 = vmatprep.subr.bf16.mxu0 0
    %396 = vmatpush2.bf16.msra.mxu0 0
    %397 = vmatprep.subr.bf16.mxu0 0
    %398 = vmatpush2.bf16.msra.mxu0 0
    %399 = vmatprep.subr.bf16.mxu0 0
    %400 = vmatpush2.bf16.msra.mxu0 0
    %401 = vmatprep.subr.bf16.mxu0 0
    %402 = vmatpush2.bf16.msra.mxu0 0
    %403 = vmatprep.subr.bf16.mxu0 0
    %404 = vmatpush2.bf16.msra.mxu0 0
    %405 = vmatprep.subr.bf16.mxu0 0
    %406 = vmatpush2.bf16.msra.mxu0 0
    %407 = vmatprep.mubr.bf16.mxu0 0
    %408 = vmatmul.mubr.bf16.gmra.mxu0 %v364
    %v409 = vpop.f32.mrf.mxu0
    %v410 = vadd.f32 0.0, %v409
    %v411 = vpop.f32.mrf.mxu0
    %v412 = vadd.f32 0.0, %v411
    %v413 = vpop.f32.mrf.mxu0
    %v414 = vadd.f32 0.0, %v413
    %v415 = vpop.f32.mrf.mxu0
    %v416 = vadd.f32 0.0, %v415
    %417 = vmatprep.mubr.bf16.mxu0 0
    %418 = vmatmul.mubr.bf16.gmra.mxu0 %v367
    %v419 = vpop.f32.mrf.mxu0
    %v420 = vadd.f32 0.0, %v419
    %v421 = vpop.f32.mrf.mxu0
    %v422 = vadd.f32 0.0, %v421
    %v423 = vpop.f32.mrf.mxu0
    %v424 = vadd.f32 0.0, %v423
    %v425 = vpop.f32.mrf.mxu0
    %v426 = vadd.f32 0.0, %v425
    %427 = vmatprep.mubr.bf16.mxu0 0
    %428 = vmatmul.mubr.bf16.gmra.mxu0 %v370
    %v429 = vpop.f32.mrf.mxu0
    %v430 = vadd.f32 0.0, %v429
    %v431 = vpop.f32.mrf.mxu0
    %v432 = vadd.f32 0.0, %v431
    %v433 = vpop.f32.mrf.mxu0
    %v434 = vadd.f32 0.0, %v433
    %v435 = vpop.f32.mrf.mxu0
    %v436 = vadd.f32 0.0, %v435
    %437 = vmatprep.mubr.bf16.mxu0 0
    %438 = vmatmul.mubr.bf16.gmra.mxu0 %v373
    %v439 = vpop.f32.mrf.mxu0
    %v440 = vadd.f32 0.0, %v439
    %v441 = vpop.f32.mrf.mxu0
    %v442 = vadd.f32 0.0, %v441
    %v443 = vpop.f32.mrf.mxu0
    %v444 = vadd.f32 0.0, %v443
    %v445 = vpop.f32.mrf.mxu0
    %v446 = vadd.f32 0.0, %v445
    %447 = vdwg.mxu0
    %v448 = vadd.f32 %v77, %v410
    %v449 = vadd.f32 %v78, %v412
    %v450 = vadd.f32 %v79, %v414
    %v451 = vadd.f32 %v80, %v416
    %v452 = vadd.f32 %v81, %v420
    %v453 = vadd.f32 %v82, %v422
    %v454 = vadd.f32 %v83, %v424
    %v455 = vadd.f32 %v84, %v426
    %v456 = vadd.f32 %v85, %v430
    %v457 = vadd.f32 %v86, %v432
    %v458 = vadd.f32 %v87, %v434
    %v459 = vadd.f32 %v88, %v436
    %v460 = vadd.f32 %v89, %v440
    %v461 = vadd.f32 %v90, %v442
    %v462 = vadd.f32 %v91, %v444
    %v463 = vadd.f32 %v92, %v446
    %v464 = vld [vmem:[%s5] sm:$0xff]
    %v465 = vld [vmem:[%s5 + $0x8] sm:$0xff]
    %v466 = vld [vmem:[%s5 + $0x10] sm:$0xff]
    %v467 = vld [vmem:[%s5 + $0x18] sm:$0xff]
    %v468 = vld [vmem:[%s5 + $0x20] sm:$0xff]
    %v469 = vld [vmem:[%s5 + $0x28] sm:$0xff]
    %v470 = vld [vmem:[%s5 + $0x30] sm:$0xff]
    %v471 = vld [vmem:[%s5 + $0x38] sm:$0xff]
    %473 = vset.pattern.permute.xlu0 0
    %474 = vperm.xlu0 %473, %v464
    %v475 = vpop.permute.xlu0 %474
    %478 = vset.pattern.permute.xlu0 0
    %479 = vperm.xlu0 %478, %v465
    %v480 = vpop.permute.xlu0 %479
    %483 = vset.pattern.permute.xlu0 0
    %484 = vperm.xlu0 %483, %v466
    %v485 = vpop.permute.xlu0 %484
    %488 = vset.pattern.permute.xlu0 0
    %489 = vperm.xlu0 %488, %v467
    %v490 = vpop.permute.xlu0 %489
    %493 = vset.pattern.permute.xlu0 0
    %494 = vperm.xlu0 %493, %v468
    %v495 = vpop.permute.xlu0 %494
    %498 = vset.pattern.permute.xlu0 0
    %499 = vperm.xlu0 %498, %v469
    %v500 = vpop.permute.xlu0 %499
    %503 = vset.pattern.permute.xlu0 0
    %504 = vperm.xlu0 %503, %v470
    %v505 = vpop.permute.xlu0 %504
    %508 = vset.pattern.permute.xlu0 0
    %509 = vperm.xlu0 %508, %v471
    %v510 = vpop.permute.xlu0 %509
    %v512 = vadd.f32 %v448, %v475
    %v513 = vadd.f32 %v449, %v475
    %v514 = vadd.f32 %v450, %v480
    %v515 = vadd.f32 %v451, %v480
    %v516 = vadd.f32 %v452, %v485
    %v517 = vadd.f32 %v453, %v485
    %v518 = vadd.f32 %v454, %v490
    %v519 = vadd.f32 %v455, %v490
    %v520 = vadd.f32 %v456, %v495
    %v521 = vadd.f32 %v457, %v495
    %v522 = vadd.f32 %v458, %v500
    %v523 = vadd.f32 %v459, %v500
    %v524 = vadd.f32 %v460, %v505
    %v525 = vadd.f32 %v461, %v505
    %v526 = vadd.f32 %v462, %v510
    %v527 = vadd.f32 %v463, %v510
    %v528 = vmul.f32 %v512, 0.2
    %v529 = vmul.f32 %v513, 0.2
    %v530 = vmul.f32 %v514, 0.2
    %v531 = vmul.f32 %v515, 0.2
    %v532 = vmul.f32 %v516, 0.2
    %v533 = vmul.f32 %v517, 0.2
    %v534 = vmul.f32 %v518, 0.2
    %v535 = vmul.f32 %v519, 0.2
    %v536 = vmul.f32 %v520, 0.2
    %v537 = vmul.f32 %v521, 0.2
    %v538 = vmul.f32 %v522, 0.2
    %v539 = vmul.f32 %v523, 0.2
    %v540 = vmul.f32 %v524, 0.2
    %v541 = vmul.f32 %v525, 0.2
    %v542 = vmul.f32 %v526, 0.2
    %v543 = vmul.f32 %v527, 0.2
    %v544 = vmax.f32 %v512, %v528
    %v545 = vmax.f32 %v513, %v529
    %v546 = vmax.f32 %v514, %v530
    %v547 = vmax.f32 %v515, %v531
    %v548 = vmax.f32 %v516, %v532
    %v549 = vmax.f32 %v517, %v533
    %v550 = vmax.f32 %v518, %v534
    %v551 = vmax.f32 %v519, %v535
    %v552 = vmax.f32 %v520, %v536
    %v553 = vmax.f32 %v521, %v537
    %v554 = vmax.f32 %v522, %v538
    %v555 = vmax.f32 %v523, %v539
    %v556 = vmax.f32 %v524, %v540
    %v557 = vmax.f32 %v525, %v541
    %v558 = vmax.f32 %v526, %v542
    %v559 = vmax.f32 %v527, %v543
    %v560 = vpack.c.bf16 %v546, %v544
    %v561 = vpack.c.bf16 %v547, %v545
    %v562 = vpack.c.bf16 %v550, %v548
    %v563 = vpack.c.bf16 %v551, %v549
    %v564 = vpack.c.bf16 %v554, %v552
    %v565 = vpack.c.bf16 %v555, %v553
    %v566 = vpack.c.bf16 %v558, %v556
    %v567 = vpack.c.bf16 %v559, %v557
    %s568 = scalar_lea.vmem %s2, 32
    %v569 = vld [vmem:[%s568] sm:$0xf]
    %v570 = vld [vmem:[%s568 + $0x4] sm:$0xf]
    %v571 = vld [vmem:[%s568 + $0x8] sm:$0xf]
    %v572 = vld [vmem:[%s568 + $0xc] sm:$0xf]
    %v573 = vld [vmem:[%s568 + $0x10] sm:$0xf]
    %v574 = vld [vmem:[%s568 + $0x14] sm:$0xf]
    %v575 = vld [vmem:[%s568 + $0x18] sm:$0xf]
    %v576 = vld [vmem:[%s568 + $0x1c] sm:$0xf]
    %s577 = scalar_lea.vmem %s3, 64
    %v578 = vld [vmem:[%s577] sm:$0xff]
    %v579 = vld [vmem:[%s577 + $0x8] sm:$0xff]
    %v580 = vld [vmem:[%s577 + $0x10] sm:$0xff]
    %v581 = vld [vmem:[%s577 + $0x18] sm:$0xff]
    %v582 = vld [vmem:[%s577 + $0x20] sm:$0xff]
    %v583 = vld [vmem:[%s577 + $0x28] sm:$0xff]
    %v584 = vld [vmem:[%s577 + $0x30] sm:$0xff]
    %v585 = vld [vmem:[%s577 + $0x38] sm:$0xff]
    %587 = vset.pattern.permute.xlu0 0
    %588 = vperm.xlu0 %587, %v578
    %v589 = vpop.permute.xlu0 %588
    %592 = vset.pattern.permute.xlu0 0
    %593 = vperm.xlu0 %592, %v579
    %v594 = vpop.permute.xlu0 %593
    %597 = vset.pattern.permute.xlu0 0
    %598 = vperm.xlu0 %597, %v580
    %v599 = vpop.permute.xlu0 %598
    %602 = vset.pattern.permute.xlu0 0
    %603 = vperm.xlu0 %602, %v581
    %v604 = vpop.permute.xlu0 %603
    %607 = vset.pattern.permute.xlu0 0
    %608 = vperm.xlu0 %607, %v582
    %v609 = vpop.permute.xlu0 %608
    %612 = vset.pattern.permute.xlu0 0
    %613 = vperm.xlu0 %612, %v583
    %v614 = vpop.permute.xlu0 %613
    %617 = vset.pattern.permute.xlu0 0
    %618 = vperm.xlu0 %617, %v584
    %v619 = vpop.permute.xlu0 %618
    %622 = vset.pattern.permute.xlu0 0
    %623 = vperm.xlu0 %622, %v585
    %v624 = vpop.permute.xlu0 %623
    %v634 = vunpack.c.l.b16 %v569
    %v635 = vunpack.c.l.b16 %v570
    %v636 = vunpack.c.l.b16 %v571
    %v637 = vunpack.c.l.b16 %v572
    %v638 = vunpack.c.l.b16 %v573
    %v639 = vunpack.c.l.b16 %v574
    %v640 = vunpack.c.l.b16 %v575
    %v641 = vunpack.c.l.b16 %v576
    %v642 = vpack.c.b16 %v635, %v634
    %v643 = vpack.c.b16 %v637, %v636
    %v644 = vpack.c.b16 %v639, %v638
    %v645 = vpack.c.b16 %v641, %v640
    %v647 = vsel %vm209, %v642, 0
    %v650 = vsel %vm209, %v643, 0
    %v653 = vsel %vm209, %v644, 0
    %v656 = vsel %vm209, %v645, 0
    %658 = vmatprep.subr.bf16.mxu0 0
    %659 = vmatpush1.bf16.msra.mxu0 0
    %660 = vmatprep.subr.bf16.mxu0 0
    %661 = vmatpush1.bf16.msra.mxu0 0
    %662 = vmatprep.subr.bf16.mxu0 0
    %663 = vmatpush1.bf16.msra.mxu0 0
    %664 = vmatprep.subr.bf16.mxu0 0
    %665 = vmatpush1.bf16.msra.mxu0 0
    %666 = vmatprep.subr.bf16.mxu0 %v567
    %667 = vmatpush1.bf16.msra.mxu0 %v566
    %668 = vmatprep.subr.bf16.mxu0 %v565
    %669 = vmatpush1.bf16.msra.mxu0 %v564
    %670 = vmatprep.subr.bf16.mxu0 %v563
    %671 = vmatpush1.bf16.msra.mxu0 %v562
    %672 = vmatprep.subr.bf16.mxu0 %v561
    %673 = vmatpush1.bf16.msra.mxu0 %v560
    %674 = vmatprep.subr.bf16.mxu0 0
    %675 = vmatpush2.bf16.msra.mxu0 0
    %676 = vmatprep.subr.bf16.mxu0 0
    %677 = vmatpush2.bf16.msra.mxu0 0
    %678 = vmatprep.subr.bf16.mxu0 0
    %679 = vmatpush2.bf16.msra.mxu0 0
    %680 = vmatprep.subr.bf16.mxu0 0
    %681 = vmatpush2.bf16.msra.mxu0 0
    %682 = vmatprep.subr.bf16.mxu0 0
    %683 = vmatpush2.bf16.msra.mxu0 0
    %684 = vmatprep.subr.bf16.mxu0 0
    %685 = vmatpush2.bf16.msra.mxu0 0
    %686 = vmatprep.subr.bf16.mxu0 0
    %687 = vmatpush2.bf16.msra.mxu0 0
    %688 = vmatprep.subr.bf16.mxu0 0
    %689 = vmatpush2.bf16.msra.mxu0 0
    %690 = vmatprep.mubr.bf16.mxu0 0
    %691 = vmatmul.mubr.bf16.gmra.mxu0 %v647
    %v692 = vpop.f32.mrf.mxu0
    %v693 = vadd.f32 %v589, %v692
    %v694 = vpop.f32.mrf.mxu0
    %v695 = vadd.f32 %v589, %v694
    %v696 = vpop.f32.mrf.mxu0
    %v697 = vadd.f32 %v594, %v696
    %v698 = vpop.f32.mrf.mxu0
    %v699 = vadd.f32 %v594, %v698
    %700 = vmatprep.mubr.bf16.mxu0 0
    %701 = vmatmul.mubr.bf16.gmra.mxu0 %v650
    %v702 = vpop.f32.mrf.mxu0
    %v703 = vadd.f32 %v599, %v702
    %v704 = vpop.f32.mrf.mxu0
    %v705 = vadd.f32 %v599, %v704
    %v706 = vpop.f32.mrf.mxu0
    %v707 = vadd.f32 %v604, %v706
    %v708 = vpop.f32.mrf.mxu0
    %v709 = vadd.f32 %v604, %v708
    %710 = vmatprep.mubr.bf16.mxu0 0
    %711 = vmatmul.mubr.bf16.gmra.mxu0 %v653
    %v712 = vpop.f32.mrf.mxu0
    %v713 = vadd.f32 %v609, %v712
    %v714 = vpop.f32.mrf.mxu0
    %v715 = vadd.f32 %v609, %v714
    %v716 = vpop.f32.mrf.mxu0
    %v717 = vadd.f32 %v614, %v716
    %v718 = vpop.f32.mrf.mxu0
    %v719 = vadd.f32 %v614, %v718
    %720 = vmatprep.mubr.bf16.mxu0 0
    %721 = vmatmul.mubr.bf16.gmra.mxu0 %v656
    %v722 = vpop.f32.mrf.mxu0
    %v723 = vadd.f32 %v619, %v722
    %v724 = vpop.f32.mrf.mxu0
    %v725 = vadd.f32 %v619, %v724
    %v726 = vpop.f32.mrf.mxu0
    %v727 = vadd.f32 %v624, %v726
    %v728 = vpop.f32.mrf.mxu0
    %v729 = vadd.f32 %v624, %v728
    %730 = vdwg.mxu0
    %v731 = vmul.f32 %v693, 0.2
    %v732 = vmul.f32 %v695, 0.2
    %v733 = vmul.f32 %v697, 0.2
    %v734 = vmul.f32 %v699, 0.2
    %v735 = vmul.f32 %v703, 0.2
    %v736 = vmul.f32 %v705, 0.2
    %v737 = vmul.f32 %v707, 0.2
    %v738 = vmul.f32 %v709, 0.2
    %v739 = vmul.f32 %v713, 0.2
    %v740 = vmul.f32 %v715, 0.2
    %v741 = vmul.f32 %v717, 0.2
    %v742 = vmul.f32 %v719, 0.2
    %v743 = vmul.f32 %v723, 0.2
    %v744 = vmul.f32 %v725, 0.2
    %v745 = vmul.f32 %v727, 0.2
    %v746 = vmul.f32 %v729, 0.2
    %v747 = vmax.f32 %v693, %v731
    %v748 = vmax.f32 %v695, %v732
    %v749 = vmax.f32 %v697, %v733
    %v750 = vmax.f32 %v699, %v734
    %v751 = vmax.f32 %v703, %v735
    %v752 = vmax.f32 %v705, %v736
    %v753 = vmax.f32 %v707, %v737
    %v754 = vmax.f32 %v709, %v738
    %v755 = vmax.f32 %v713, %v739
    %v756 = vmax.f32 %v715, %v740
    %v757 = vmax.f32 %v717, %v741
    %v758 = vmax.f32 %v719, %v742
    %v759 = vmax.f32 %v723, %v743
    %v760 = vmax.f32 %v725, %v744
    %v761 = vmax.f32 %v727, %v745
    %v762 = vmax.f32 %v729, %v746
    %v763 = vpack.c.bf16 %v749, %v747
    %v764 = vpack.c.bf16 %v750, %v748
    %v765 = vpack.c.bf16 %v753, %v751
    %v766 = vpack.c.bf16 %v754, %v752
    %v767 = vpack.c.bf16 %v757, %v755
    %v768 = vpack.c.bf16 %v758, %v756
    %v769 = vpack.c.bf16 %v761, %v759
    %v770 = vpack.c.bf16 %v762, %v760
    %s771 = scalar_lea.vmem %s4, 32
    %v772 = vld [vmem:[%s771] sm:$0xf]
    %v773 = vld [vmem:[%s771 + $0x4] sm:$0xf]
    %v774 = vld [vmem:[%s771 + $0x8] sm:$0xf]
    %v775 = vld [vmem:[%s771 + $0xc] sm:$0xf]
    %v776 = vld [vmem:[%s771 + $0x10] sm:$0xf]
    %v777 = vld [vmem:[%s771 + $0x14] sm:$0xf]
    %v778 = vld [vmem:[%s771 + $0x18] sm:$0xf]
    %v779 = vld [vmem:[%s771 + $0x1c] sm:$0xf]
    %v788 = vunpack.c.l.b16 %v772
    %v789 = vunpack.c.l.b16 %v773
    %v790 = vunpack.c.l.b16 %v774
    %v791 = vunpack.c.l.b16 %v775
    %v792 = vunpack.c.l.b16 %v776
    %v793 = vunpack.c.l.b16 %v777
    %v794 = vunpack.c.l.b16 %v778
    %v795 = vunpack.c.l.b16 %v779
    %v796 = vpack.c.b16 %v789, %v788
    %v797 = vpack.c.b16 %v791, %v790
    %v798 = vpack.c.b16 %v793, %v792
    %v799 = vpack.c.b16 %v795, %v794
    %v801 = vsel %vm209, %v796, 0
    %v804 = vsel %vm209, %v797, 0
    %v807 = vsel %vm209, %v798, 0
    %v810 = vsel %vm209, %v799, 0
    %812 = vmatprep.subr.bf16.mxu0 0
    %813 = vmatpush1.bf16.msra.mxu0 0
    %814 = vmatprep.subr.bf16.mxu0 0
    %815 = vmatpush1.bf16.msra.mxu0 0
    %816 = vmatprep.subr.bf16.mxu0 0
    %817 = vmatpush1.bf16.msra.mxu0 0
    %818 = vmatprep.subr.bf16.mxu0 0
    %819 = vmatpush1.bf16.msra.mxu0 0
    %820 = vmatprep.subr.bf16.mxu0 %v770
    %821 = vmatpush1.bf16.msra.mxu0 %v769
    %822 = vmatprep.subr.bf16.mxu0 %v768
    %823 = vmatpush1.bf16.msra.mxu0 %v767
    %824 = vmatprep.subr.bf16.mxu0 %v766
    %825 = vmatpush1.bf16.msra.mxu0 %v765
    %826 = vmatprep.subr.bf16.mxu0 %v764
    %827 = vmatpush1.bf16.msra.mxu0 %v763
    %828 = vmatprep.subr.bf16.mxu0 0
    %829 = vmatpush2.bf16.msra.mxu0 0
    %830 = vmatprep.subr.bf16.mxu0 0
    %831 = vmatpush2.bf16.msra.mxu0 0
    %832 = vmatprep.subr.bf16.mxu0 0
    %833 = vmatpush2.bf16.msra.mxu0 0
    %834 = vmatprep.subr.bf16.mxu0 0
    %835 = vmatpush2.bf16.msra.mxu0 0
    %836 = vmatprep.subr.bf16.mxu0 0
    %837 = vmatpush2.bf16.msra.mxu0 0
    %838 = vmatprep.subr.bf16.mxu0 0
    %839 = vmatpush2.bf16.msra.mxu0 0
    %840 = vmatprep.subr.bf16.mxu0 0
    %841 = vmatpush2.bf16.msra.mxu0 0
    %842 = vmatprep.subr.bf16.mxu0 0
    %843 = vmatpush2.bf16.msra.mxu0 0
    %844 = vmatprep.mubr.bf16.mxu0 0
    %845 = vmatmul.mubr.bf16.gmra.mxu0 %v801
    %v846 = vpop.f32.mrf.mxu0
    %v847 = vadd.f32 0.0, %v846
    %v848 = vpop.f32.mrf.mxu0
    %v849 = vadd.f32 0.0, %v848
    %v850 = vpop.f32.mrf.mxu0
    %v851 = vadd.f32 0.0, %v850
    %v852 = vpop.f32.mrf.mxu0
    %v853 = vadd.f32 0.0, %v852
    %854 = vmatprep.mubr.bf16.mxu0 0
    %855 = vmatmul.mubr.bf16.gmra.mxu0 %v804
    %v856 = vpop.f32.mrf.mxu0
    %v857 = vadd.f32 0.0, %v856
    %v858 = vpop.f32.mrf.mxu0
    %v859 = vadd.f32 0.0, %v858
    %v860 = vpop.f32.mrf.mxu0
    %v861 = vadd.f32 0.0, %v860
    %v862 = vpop.f32.mrf.mxu0
    %v863 = vadd.f32 0.0, %v862
    %864 = vmatprep.mubr.bf16.mxu0 0
    %865 = vmatmul.mubr.bf16.gmra.mxu0 %v807
    %v866 = vpop.f32.mrf.mxu0
    %v867 = vadd.f32 0.0, %v866
    %v868 = vpop.f32.mrf.mxu0
    %v869 = vadd.f32 0.0, %v868
    %v870 = vpop.f32.mrf.mxu0
    %v871 = vadd.f32 0.0, %v870
    %v872 = vpop.f32.mrf.mxu0
    %v873 = vadd.f32 0.0, %v872
    %874 = vmatprep.mubr.bf16.mxu0 0
    %875 = vmatmul.mubr.bf16.gmra.mxu0 %v810
    %v876 = vpop.f32.mrf.mxu0
    %v877 = vadd.f32 0.0, %v876
    %v878 = vpop.f32.mrf.mxu0
    %v879 = vadd.f32 0.0, %v878
    %v880 = vpop.f32.mrf.mxu0
    %v881 = vadd.f32 0.0, %v880
    %v882 = vpop.f32.mrf.mxu0
    %v883 = vadd.f32 0.0, %v882
    %884 = vdwg.mxu0
    %v885 = vadd.f32 %v512, %v847
    %v886 = vadd.f32 %v513, %v849
    %v887 = vadd.f32 %v514, %v851
    %v888 = vadd.f32 %v515, %v853
    %v889 = vadd.f32 %v516, %v857
    %v890 = vadd.f32 %v517, %v859
    %v891 = vadd.f32 %v518, %v861
    %v892 = vadd.f32 %v519, %v863
    %v893 = vadd.f32 %v520, %v867
    %v894 = vadd.f32 %v521, %v869
    %v895 = vadd.f32 %v522, %v871
    %v896 = vadd.f32 %v523, %v873
    %v897 = vadd.f32 %v524, %v877
    %v898 = vadd.f32 %v525, %v879
    %v899 = vadd.f32 %v526, %v881
    %v900 = vadd.f32 %v527, %v883
    %s901 = scalar_lea.vmem %s5, 64
    %v902 = vld [vmem:[%s901] sm:$0xff]
    %v903 = vld [vmem:[%s901 + $0x8] sm:$0xff]
    %v904 = vld [vmem:[%s901 + $0x10] sm:$0xff]
    %v905 = vld [vmem:[%s901 + $0x18] sm:$0xff]
    %v906 = vld [vmem:[%s901 + $0x20] sm:$0xff]
    %v907 = vld [vmem:[%s901 + $0x28] sm:$0xff]
    %v908 = vld [vmem:[%s901 + $0x30] sm:$0xff]
    %v909 = vld [vmem:[%s901 + $0x38] sm:$0xff]
    %911 = vset.pattern.permute.xlu0 0
    %912 = vperm.xlu0 %911, %v902
    %v913 = vpop.permute.xlu0 %912
    %916 = vset.pattern.permute.xlu0 0
    %917 = vperm.xlu0 %916, %v903
    %v918 = vpop.permute.xlu0 %917
    %921 = vset.pattern.permute.xlu0 0
    %922 = vperm.xlu0 %921, %v904
    %v923 = vpop.permute.xlu0 %922
    %926 = vset.pattern.permute.xlu0 0
    %927 = vperm.xlu0 %926, %v905
    %v928 = vpop.permute.xlu0 %927
    %931 = vset.pattern.permute.xlu0 0
    %932 = vperm.xlu0 %931, %v906
    %v933 = vpop.permute.xlu0 %932
    %936 = vset.pattern.permute.xlu0 0
    %937 = vperm.xlu0 %936, %v907
    %v938 = vpop.permute.xlu0 %937
    %941 = vset.pattern.permute.xlu0 0
    %942 = vperm.xlu0 %941, %v908
    %v943 = vpop.permute.xlu0 %942
    %946 = vset.pattern.permute.xlu0 0
    %947 = vperm.xlu0 %946, %v909
    %v948 = vpop.permute.xlu0 %947
    %v950 = vadd.f32 %v885, %v913
    %v951 = vadd.f32 %v886, %v913
    %v952 = vadd.f32 %v887, %v918
    %v953 = vadd.f32 %v888, %v918
    %v954 = vadd.f32 %v889, %v923
    %v955 = vadd.f32 %v890, %v923
    %v956 = vadd.f32 %v891, %v928
    %v957 = vadd.f32 %v892, %v928
    %v958 = vadd.f32 %v893, %v933
    %v959 = vadd.f32 %v894, %v933
    %v960 = vadd.f32 %v895, %v938
    %v961 = vadd.f32 %v896, %v938
    %v962 = vadd.f32 %v897, %v943
    %v963 = vadd.f32 %v898, %v943
    %v964 = vadd.f32 %v899, %v948
    %v965 = vadd.f32 %v900, %v948
    %v966 = vmul.f32 %v950, 0.2
    %v967 = vmul.f32 %v951, 0.2
    %v968 = vmul.f32 %v952, 0.2
    %v969 = vmul.f32 %v953, 0.2
    %v970 = vmul.f32 %v954, 0.2
    %v971 = vmul.f32 %v955, 0.2
    %v972 = vmul.f32 %v956, 0.2
    %v973 = vmul.f32 %v957, 0.2
    %v974 = vmul.f32 %v958, 0.2
    %v975 = vmul.f32 %v959, 0.2
    %v976 = vmul.f32 %v960, 0.2
    %v977 = vmul.f32 %v961, 0.2
    %v978 = vmul.f32 %v962, 0.2
    %v979 = vmul.f32 %v963, 0.2
    %v980 = vmul.f32 %v964, 0.2
    %v981 = vmul.f32 %v965, 0.2
    %v982 = vmax.f32 %v950, %v966
    %v983 = vmax.f32 %v951, %v967
    %v984 = vmax.f32 %v952, %v968
    %v985 = vmax.f32 %v953, %v969
    %v986 = vmax.f32 %v954, %v970
    %v987 = vmax.f32 %v955, %v971
    %v988 = vmax.f32 %v956, %v972
    %v989 = vmax.f32 %v957, %v973
    %v990 = vmax.f32 %v958, %v974
    %v991 = vmax.f32 %v959, %v975
    %v992 = vmax.f32 %v960, %v976
    %v993 = vmax.f32 %v961, %v977
    %v994 = vmax.f32 %v962, %v978
    %v995 = vmax.f32 %v963, %v979
    %v996 = vmax.f32 %v964, %v980
    %v997 = vmax.f32 %v965, %v981
    %v998 = vpack.c.bf16 %v984, %v982
    %v999 = vpack.c.bf16 %v985, %v983
    %v1000 = vpack.c.bf16 %v988, %v986
    %v1001 = vpack.c.bf16 %v989, %v987
    %v1002 = vpack.c.bf16 %v992, %v990
    %v1003 = vpack.c.bf16 %v993, %v991
    %v1004 = vpack.c.bf16 %v996, %v994
    %v1005 = vpack.c.bf16 %v997, %v995
    %s1006 = scalar_lea.vmem %s2, 64
    %v1007 = vld [vmem:[%s1006] sm:$0xf]
    %v1008 = vld [vmem:[%s1006 + $0x4] sm:$0xf]
    %v1009 = vld [vmem:[%s1006 + $0x8] sm:$0xf]
    %v1010 = vld [vmem:[%s1006 + $0xc] sm:$0xf]
    %v1011 = vld [vmem:[%s1006 + $0x10] sm:$0xf]
    %v1012 = vld [vmem:[%s1006 + $0x14] sm:$0xf]
    %v1013 = vld [vmem:[%s1006 + $0x18] sm:$0xf]
    %v1014 = vld [vmem:[%s1006 + $0x1c] sm:$0xf]
    %s1015 = scalar_lea.vmem %s3, 128
    %v1016 = vld [vmem:[%s1015] sm:$0xff]
    %v1017 = vld [vmem:[%s1015 + $0x8] sm:$0xff]
    %v1018 = vld [vmem:[%s1015 + $0x10] sm:$0xff]
    %v1019 = vld [vmem:[%s1015 + $0x18] sm:$0xff]
    %v1020 = vld [vmem:[%s1015 + $0x20] sm:$0xff]
    %v1021 = vld [vmem:[%s1015 + $0x28] sm:$0xff]
    %v1022 = vld [vmem:[%s1015 + $0x30] sm:$0xff]
    %v1023 = vld [vmem:[%s1015 + $0x38] sm:$0xff]
    %1025 = vset.pattern.permute.xlu0 0
    %1026 = vperm.xlu0 %1025, %v1016
    %v1027 = vpop.permute.xlu0 %1026
    %1030 = vset.pattern.permute.xlu0 0
    %1031 = vperm.xlu0 %1030, %v1017
    %v1032 = vpop.permute.xlu0 %1031
    %1035 = vset.pattern.permute.xlu0 0
    %1036 = vperm.xlu0 %1035, %v1018
    %v1037 = vpop.permute.xlu0 %1036
    %1040 = vset.pattern.permute.xlu0 0
    %1041 = vperm.xlu0 %1040, %v1019
    %v1042 = vpop.permute.xlu0 %1041
    %1045 = vset.pattern.permute.xlu0 0
    %1046 = vperm.xlu0 %1045, %v1020
    %v1047 = vpop.permute.xlu0 %1046
    %1050 = vset.pattern.permute.xlu0 0
    %1051 = vperm.xlu0 %1050, %v1021
    %v1052 = vpop.permute.xlu0 %1051
    %1055 = vset.pattern.permute.xlu0 0
    %1056 = vperm.xlu0 %1055, %v1022
    %v1057 = vpop.permute.xlu0 %1056
    %1060 = vset.pattern.permute.xlu0 0
    %1061 = vperm.xlu0 %1060, %v1023
    %v1062 = vpop.permute.xlu0 %1061
    %v1072 = vunpack.c.l.b16 %v1007
    %v1073 = vunpack.c.l.b16 %v1008
    %v1074 = vunpack.c.l.b16 %v1009
    %v1075 = vunpack.c.l.b16 %v1010
    %v1076 = vunpack.c.l.b16 %v1011
    %v1077 = vunpack.c.l.b16 %v1012
    %v1078 = vunpack.c.l.b16 %v1013
    %v1079 = vunpack.c.l.b16 %v1014
    %v1080 = vpack.c.b16 %v1073, %v1072
    %v1081 = vpack.c.b16 %v1075, %v1074
    %v1082 = vpack.c.b16 %v1077, %v1076
    %v1083 = vpack.c.b16 %v1079, %v1078
    %v1085 = vsel %vm209, %v1080, 0
    %v1088 = vsel %vm209, %v1081, 0
    %v1091 = vsel %vm209, %v1082, 0
    %v1094 = vsel %vm209, %v1083, 0
    %1096 = vmatprep.subr.bf16.mxu0 0
    %1097 = vmatpush1.bf16.msra.mxu0 0
    %1098 = vmatprep.subr.bf16.mxu0 0
    %1099 = vmatpush1.bf16.msra.mxu0 0
    %1100 = vmatprep.subr.bf16.mxu0 0
    %1101 = vmatpush1.bf16.msra.mxu0 0
    %1102 = vmatprep.subr.bf16.mxu0 0
    %1103 = vmatpush1.bf16.msra.mxu0 0
    %1104 = vmatprep.subr.bf16.mxu0 %v1005
    %1105 = vmatpush1.bf16.msra.mxu0 %v1004
    %1106 = vmatprep.subr.bf16.mxu0 %v1003
    %1107 = vmatpush1.bf16.msra.mxu0 %v1002
    %1108 = vmatprep.subr.bf16.mxu0 %v1001
    %1109 = vmatpush1.bf16.msra.mxu0 %v1000
    %1110 = vmatprep.subr.bf16.mxu0 %v999
    %1111 = vmatpush1.bf16.msra.mxu0 %v998
    %1112 = vmatprep.subr.bf16.mxu0 0
    %1113 = vmatpush2.bf16.msra.mxu0 0
    %1114 = vmatprep.subr.bf16.mxu0 0
    %1115 = vmatpush2.bf16.msra.mxu0 0
    %1116 = vmatprep.subr.bf16.mxu0 0
    %1117 = vmatpush2.bf16.msra.mxu0 0
    %1118 = vmatprep.subr.bf16.mxu0 0
    %1119 = vmatpush2.bf16.msra.mxu0 0
    %1120 = vmatprep.subr.bf16.mxu0 0
    %1121 = vmatpush2.bf16.msra.mxu0 0
    %1122 = vmatprep.subr.bf16.mxu0 0
    %1123 = vmatpush2.bf16.msra.mxu0 0
    %1124 = vmatprep.subr.bf16.mxu0 0
    %1125 = vmatpush2.bf16.msra.mxu0 0
    %1126 = vmatprep.subr.bf16.mxu0 0
    %1127 = vmatpush2.bf16.msra.mxu0 0
    %1128 = vmatprep.mubr.bf16.mxu0 0
    %1129 = vmatmul.mubr.bf16.gmra.mxu0 %v1085
    %v1130 = vpop.f32.mrf.mxu0
    %v1131 = vadd.f32 %v1027, %v1130
    %v1132 = vpop.f32.mrf.mxu0
    %v1133 = vadd.f32 %v1027, %v1132
    %v1134 = vpop.f32.mrf.mxu0
    %v1135 = vadd.f32 %v1032, %v1134
    %v1136 = vpop.f32.mrf.mxu0
    %v1137 = vadd.f32 %v1032, %v1136
    %1138 = vmatprep.mubr.bf16.mxu0 0
    %1139 = vmatmul.mubr.bf16.gmra.mxu0 %v1088
    %v1140 = vpop.f32.mrf.mxu0
    %v1141 = vadd.f32 %v1037, %v1140
    %v1142 = vpop.f32.mrf.mxu0
    %v1143 = vadd.f32 %v1037, %v1142
    %v1144 = vpop.f32.mrf.mxu0
    %v1145 = vadd.f32 %v1042, %v1144
    %v1146 = vpop.f32.mrf.mxu0
    %v1147 = vadd.f32 %v1042, %v1146
    %1148 = vmatprep.mubr.bf16.mxu0 0
    %1149 = vmatmul.mubr.bf16.gmra.mxu0 %v1091
    %v1150 = vpop.f32.mrf.mxu0
    %v1151 = vadd.f32 %v1047, %v1150
    %v1152 = vpop.f32.mrf.mxu0
    %v1153 = vadd.f32 %v1047, %v1152
    %v1154 = vpop.f32.mrf.mxu0
    %v1155 = vadd.f32 %v1052, %v1154
    %v1156 = vpop.f32.mrf.mxu0
    %v1157 = vadd.f32 %v1052, %v1156
    %1158 = vmatprep.mubr.bf16.mxu0 0
    %1159 = vmatmul.mubr.bf16.gmra.mxu0 %v1094
    %v1160 = vpop.f32.mrf.mxu0
    %v1161 = vadd.f32 %v1057, %v1160
    %v1162 = vpop.f32.mrf.mxu0
    %v1163 = vadd.f32 %v1057, %v1162
    %v1164 = vpop.f32.mrf.mxu0
    %v1165 = vadd.f32 %v1062, %v1164
    %v1166 = vpop.f32.mrf.mxu0
    %v1167 = vadd.f32 %v1062, %v1166
    %1168 = vdwg.mxu0
    %v1169 = vmul.f32 %v1131, 0.2
    %v1170 = vmul.f32 %v1133, 0.2
    %v1171 = vmul.f32 %v1135, 0.2
    %v1172 = vmul.f32 %v1137, 0.2
    %v1173 = vmul.f32 %v1141, 0.2
    %v1174 = vmul.f32 %v1143, 0.2
    %v1175 = vmul.f32 %v1145, 0.2
    %v1176 = vmul.f32 %v1147, 0.2
    %v1177 = vmul.f32 %v1151, 0.2
    %v1178 = vmul.f32 %v1153, 0.2
    %v1179 = vmul.f32 %v1155, 0.2
    %v1180 = vmul.f32 %v1157, 0.2
    %v1181 = vmul.f32 %v1161, 0.2
    %v1182 = vmul.f32 %v1163, 0.2
    %v1183 = vmul.f32 %v1165, 0.2
    %v1184 = vmul.f32 %v1167, 0.2
    %v1185 = vmax.f32 %v1131, %v1169
    %v1186 = vmax.f32 %v1133, %v1170
    %v1187 = vmax.f32 %v1135, %v1171
    %v1188 = vmax.f32 %v1137, %v1172
    %v1189 = vmax.f32 %v1141, %v1173
    %v1190 = vmax.f32 %v1143, %v1174
    %v1191 = vmax.f32 %v1145, %v1175
    %v1192 = vmax.f32 %v1147, %v1176
    %v1193 = vmax.f32 %v1151, %v1177
    %v1194 = vmax.f32 %v1153, %v1178
    %v1195 = vmax.f32 %v1155, %v1179
    %v1196 = vmax.f32 %v1157, %v1180
    %v1197 = vmax.f32 %v1161, %v1181
    %v1198 = vmax.f32 %v1163, %v1182
    %v1199 = vmax.f32 %v1165, %v1183
    %v1200 = vmax.f32 %v1167, %v1184
    %v1201 = vpack.c.bf16 %v1187, %v1185
    %v1202 = vpack.c.bf16 %v1188, %v1186
    %v1203 = vpack.c.bf16 %v1191, %v1189
    %v1204 = vpack.c.bf16 %v1192, %v1190
    %v1205 = vpack.c.bf16 %v1195, %v1193
    %v1206 = vpack.c.bf16 %v1196, %v1194
    %v1207 = vpack.c.bf16 %v1199, %v1197
    %v1208 = vpack.c.bf16 %v1200, %v1198
    %s1209 = scalar_lea.vmem %s4, 64
    %v1210 = vld [vmem:[%s1209] sm:$0xf]
    %v1211 = vld [vmem:[%s1209 + $0x4] sm:$0xf]
    %v1212 = vld [vmem:[%s1209 + $0x8] sm:$0xf]
    %v1213 = vld [vmem:[%s1209 + $0xc] sm:$0xf]
    %v1214 = vld [vmem:[%s1209 + $0x10] sm:$0xf]
    %v1215 = vld [vmem:[%s1209 + $0x14] sm:$0xf]
    %v1216 = vld [vmem:[%s1209 + $0x18] sm:$0xf]
    %v1217 = vld [vmem:[%s1209 + $0x1c] sm:$0xf]
    %v1226 = vunpack.c.l.b16 %v1210
    %v1227 = vunpack.c.l.b16 %v1211
    %v1228 = vunpack.c.l.b16 %v1212
    %v1229 = vunpack.c.l.b16 %v1213
    %v1230 = vunpack.c.l.b16 %v1214
    %v1231 = vunpack.c.l.b16 %v1215
    %v1232 = vunpack.c.l.b16 %v1216
    %v1233 = vunpack.c.l.b16 %v1217
    %v1234 = vpack.c.b16 %v1227, %v1226
    %v1235 = vpack.c.b16 %v1229, %v1228
    %v1236 = vpack.c.b16 %v1231, %v1230
    %v1237 = vpack.c.b16 %v1233, %v1232
    %v1239 = vsel %vm209, %v1234, 0
    %v1242 = vsel %vm209, %v1235, 0
    %v1245 = vsel %vm209, %v1236, 0
    %v1248 = vsel %vm209, %v1237, 0
    %1250 = vmatprep.subr.bf16.mxu0 0
    %1251 = vmatpush1.bf16.msra.mxu0 0
    %1252 = vmatprep.subr.bf16.mxu0 0
    %1253 = vmatpush1.bf16.msra.mxu0 0
    %1254 = vmatprep.subr.bf16.mxu0 0
    %1255 = vmatpush1.bf16.msra.mxu0 0
    %1256 = vmatprep.subr.bf16.mxu0 0
    %1257 = vmatpush1.bf16.msra.mxu0 0
    %1258 = vmatprep.subr.bf16.mxu0 %v1208
    %1259 = vmatpush1.bf16.msra.mxu0 %v1207
    %1260 = vmatprep.subr.bf16.mxu0 %v1206
    %1261 = vmatpush1.bf16.msra.mxu0 %v1205
    %1262 = vmatprep.subr.bf16.mxu0 %v1204
    %1263 = vmatpush1.bf16.msra.mxu0 %v1203
    %1264 = vmatprep.subr.bf16.mxu0 %v1202
    %1265 = vmatpush1.bf16.msra.mxu0 %v1201
    %1266 = vmatprep.subr.bf16.mxu0 0
    %1267 = vmatpush2.bf16.msra.mxu0 0
    %1268 = vmatprep.subr.bf16.mxu0 0
    %1269 = vmatpush2.bf16.msra.mxu0 0
    %1270 = vmatprep.subr.bf16.mxu0 0
    %1271 = vmatpush2.bf16.msra.mxu0 0
    %1272 = vmatprep.subr.bf16.mxu0 0
    %1273 = vmatpush2.bf16.msra.mxu0 0
    %1274 = vmatprep.subr.bf16.mxu0 0
    %1275 = vmatpush2.bf16.msra.mxu0 0
    %1276 = vmatprep.subr.bf16.mxu0 0
    %1277 = vmatpush2.bf16.msra.mxu0 0
    %1278 = vmatprep.subr.bf16.mxu0 0
    %1279 = vmatpush2.bf16.msra.mxu0 0
    %1280 = vmatprep.subr.bf16.mxu0 0
    %1281 = vmatpush2.bf16.msra.mxu0 0
    %1282 = vmatprep.mubr.bf16.mxu0 0
    %1283 = vmatmul.mubr.bf16.gmra.mxu0 %v1239
    %v1284 = vpop.f32.mrf.mxu0
    %v1285 = vadd.f32 0.0, %v1284
    %v1286 = vpop.f32.mrf.mxu0
    %v1287 = vadd.f32 0.0, %v1286
    %v1288 = vpop.f32.mrf.mxu0
    %v1289 = vadd.f32 0.0, %v1288
    %v1290 = vpop.f32.mrf.mxu0
    %v1291 = vadd.f32 0.0, %v1290
    %1292 = vmatprep.mubr.bf16.mxu0 0
    %1293 = vmatmul.mubr.bf16.gmra.mxu0 %v1242
    %v1294 = vpop.f32.mrf.mxu0
    %v1295 = vadd.f32 0.0, %v1294
    %v1296 = vpop.f32.mrf.mxu0
    %v1297 = vadd.f32 0.0, %v1296
    %v1298 = vpop.f32.mrf.mxu0
    %v1299 = vadd.f32 0.0, %v1298
    %v1300 = vpop.f32.mrf.mxu0
    %v1301 = vadd.f32 0.0, %v1300
    %1302 = vmatprep.mubr.bf16.mxu0 0
    %1303 = vmatmul.mubr.bf16.gmra.mxu0 %v1245
    %v1304 = vpop.f32.mrf.mxu0
    %v1305 = vadd.f32 0.0, %v1304
    %v1306 = vpop.f32.mrf.mxu0
    %v1307 = vadd.f32 0.0, %v1306
    %v1308 = vpop.f32.mrf.mxu0
    %v1309 = vadd.f32 0.0, %v1308
    %v1310 = vpop.f32.mrf.mxu0
    %v1311 = vadd.f32 0.0, %v1310
    %1312 = vmatprep.mubr.bf16.mxu0 0
    %1313 = vmatmul.mubr.bf16.gmra.mxu0 %v1248
    %v1314 = vpop.f32.mrf.mxu0
    %v1315 = vadd.f32 0.0, %v1314
    %v1316 = vpop.f32.mrf.mxu0
    %v1317 = vadd.f32 0.0, %v1316
    %v1318 = vpop.f32.mrf.mxu0
    %v1319 = vadd.f32 0.0, %v1318
    %v1320 = vpop.f32.mrf.mxu0
    %v1321 = vadd.f32 0.0, %v1320
    %1322 = vdwg.mxu0
    %v1323 = vadd.f32 %v950, %v1285
    %v1324 = vadd.f32 %v951, %v1287
    %v1325 = vadd.f32 %v952, %v1289
    %v1326 = vadd.f32 %v953, %v1291
    %v1327 = vadd.f32 %v954, %v1295
    %v1328 = vadd.f32 %v955, %v1297
    %v1329 = vadd.f32 %v956, %v1299
    %v1330 = vadd.f32 %v957, %v1301
    %v1331 = vadd.f32 %v958, %v1305
    %v1332 = vadd.f32 %v959, %v1307
    %v1333 = vadd.f32 %v960, %v1309
    %v1334 = vadd.f32 %v961, %v1311
    %v1335 = vadd.f32 %v962, %v1315
    %v1336 = vadd.f32 %v963, %v1317
    %v1337 = vadd.f32 %v964, %v1319
    %v1338 = vadd.f32 %v965, %v1321
    %s1339 = scalar_lea.vmem %s5, 128
    %v1340 = vld [vmem:[%s1339] sm:$0xff]
    %v1341 = vld [vmem:[%s1339 + $0x8] sm:$0xff]
    %v1342 = vld [vmem:[%s1339 + $0x10] sm:$0xff]
    %v1343 = vld [vmem:[%s1339 + $0x18] sm:$0xff]
    %v1344 = vld [vmem:[%s1339 + $0x20] sm:$0xff]
    %v1345 = vld [vmem:[%s1339 + $0x28] sm:$0xff]
    %v1346 = vld [vmem:[%s1339 + $0x30] sm:$0xff]
    %v1347 = vld [vmem:[%s1339 + $0x38] sm:$0xff]
    %1349 = vset.pattern.permute.xlu0 0
    %1350 = vperm.xlu0 %1349, %v1340
    %v1351 = vpop.permute.xlu0 %1350
    %1354 = vset.pattern.permute.xlu0 0
    %1355 = vperm.xlu0 %1354, %v1341
    %v1356 = vpop.permute.xlu0 %1355
    %1359 = vset.pattern.permute.xlu0 0
    %1360 = vperm.xlu0 %1359, %v1342
    %v1361 = vpop.permute.xlu0 %1360
    %1364 = vset.pattern.permute.xlu0 0
    %1365 = vperm.xlu0 %1364, %v1343
    %v1366 = vpop.permute.xlu0 %1365
    %1369 = vset.pattern.permute.xlu0 0
    %1370 = vperm.xlu0 %1369, %v1344
    %v1371 = vpop.permute.xlu0 %1370
    %1374 = vset.pattern.permute.xlu0 0
    %1375 = vperm.xlu0 %1374, %v1345
    %v1376 = vpop.permute.xlu0 %1375
    %1379 = vset.pattern.permute.xlu0 0
    %1380 = vperm.xlu0 %1379, %v1346
    %v1381 = vpop.permute.xlu0 %1380
    %1384 = vset.pattern.permute.xlu0 0
    %1385 = vperm.xlu0 %1384, %v1347
    %v1386 = vpop.permute.xlu0 %1385
    %v1388 = vadd.f32 %v1323, %v1351
    %v1389 = vadd.f32 %v1324, %v1351
    %v1390 = vadd.f32 %v1325, %v1356
    %v1391 = vadd.f32 %v1326, %v1356
    %v1392 = vadd.f32 %v1327, %v1361
    %v1393 = vadd.f32 %v1328, %v1361
    %v1394 = vadd.f32 %v1329, %v1366
    %v1395 = vadd.f32 %v1330, %v1366
    %v1396 = vadd.f32 %v1331, %v1371
    %v1397 = vadd.f32 %v1332, %v1371
    %v1398 = vadd.f32 %v1333, %v1376
    %v1399 = vadd.f32 %v1334, %v1376
    %v1400 = vadd.f32 %v1335, %v1381
    %v1401 = vadd.f32 %v1336, %v1381
    %v1402 = vadd.f32 %v1337, %v1386
    %v1403 = vadd.f32 %v1338, %v1386
    %v1404 = vld [vmem:[%s6] sm:$0x1]
    %v1405 = vmul.f32 %v1388, 0.2
    %v1406 = vmul.f32 %v1389, 0.2
    %v1407 = vmul.f32 %v1390, 0.2
    %v1408 = vmul.f32 %v1391, 0.2
    %v1409 = vmul.f32 %v1392, 0.2
    %v1410 = vmul.f32 %v1393, 0.2
    %v1411 = vmul.f32 %v1394, 0.2
    %v1412 = vmul.f32 %v1395, 0.2
    %v1413 = vmul.f32 %v1396, 0.2
    %v1414 = vmul.f32 %v1397, 0.2
    %v1415 = vmul.f32 %v1398, 0.2
    %v1416 = vmul.f32 %v1399, 0.2
    %v1417 = vmul.f32 %v1400, 0.2
    %v1418 = vmul.f32 %v1401, 0.2
    %v1419 = vmul.f32 %v1402, 0.2
    %v1420 = vmul.f32 %v1403, 0.2
    %v1421 = vmax.f32 %v1388, %v1405
    %v1422 = vmax.f32 %v1389, %v1406
    %v1423 = vmax.f32 %v1390, %v1407
    %v1424 = vmax.f32 %v1391, %v1408
    %v1425 = vmax.f32 %v1392, %v1409
    %v1426 = vmax.f32 %v1393, %v1410
    %v1427 = vmax.f32 %v1394, %v1411
    %v1428 = vmax.f32 %v1395, %v1412
    %v1429 = vmax.f32 %v1396, %v1413
    %v1430 = vmax.f32 %v1397, %v1414
    %v1431 = vmax.f32 %v1398, %v1415
    %v1432 = vmax.f32 %v1399, %v1416
    %v1433 = vmax.f32 %v1400, %v1417
    %v1434 = vmax.f32 %v1401, %v1418
    %v1435 = vmax.f32 %v1402, %v1419
    %v1436 = vmax.f32 %v1403, %v1420
    %v1437 = vpack.c.bf16 %v1423, %v1421
    %v1438 = vpack.c.bf16 %v1424, %v1422
    %v1439 = vpack.c.bf16 %v1427, %v1425
    %v1440 = vpack.c.bf16 %v1428, %v1426
    %v1441 = vpack.c.bf16 %v1431, %v1429
    %v1442 = vpack.c.bf16 %v1432, %v1430
    %v1443 = vpack.c.bf16 %v1435, %v1433
    %v1444 = vpack.c.bf16 %v1436, %v1434
    %v1445 = vld [vmem:[%s7] sm:$0x1]
    %s1446 = sld [smem:[#allocation3]]
    %v1447 = vstv %s1446
    %v1449 = vsel %vm209, %v1445, 0
    %1451 = vmatprep.subr.bf16.mxu0 0
    %1452 = vmatpush1.bf16.msra.mxu0 0
    %1453 = vmatprep.subr.bf16.mxu0 0
    %1454 = vmatpush1.bf16.msra.mxu0 0
    %1455 = vmatprep.subr.bf16.mxu0 0
    %1456 = vmatpush1.bf16.msra.mxu0 0
    %1457 = vmatprep.subr.bf16.mxu0 0
    %1458 = vmatpush1.bf16.msra.mxu0 0
    %1459 = vmatprep.subr.bf16.mxu0 %v1444
    %1460 = vmatpush1.bf16.msra.mxu0 %v1443
    %1461 = vmatprep.subr.bf16.mxu0 %v1442
    %1462 = vmatpush1.bf16.msra.mxu0 %v1441
    %1463 = vmatprep.subr.bf16.mxu0 %v1440
    %1464 = vmatpush1.bf16.msra.mxu0 %v1439
    %1465 = vmatprep.subr.bf16.mxu0 %v1438
    %1466 = vmatpush1.bf16.msra.mxu0 %v1437
    %1467 = vmatprep.subr.bf16.mxu0 0
    %1468 = vmatpush2.bf16.msra.mxu0 0
    %1469 = vmatprep.subr.bf16.mxu0 0
    %1470 = vmatpush2.bf16.msra.mxu0 0
    %1471 = vmatprep.subr.bf16.mxu0 0
    %1472 = vmatpush2.bf16.msra.mxu0 0
    %1473 = vmatprep.subr.bf16.mxu0 0
    %1474 = vmatpush2.bf16.msra.mxu0 0
    %1475 = vmatprep.subr.bf16.mxu0 0
    %1476 = vmatpush2.bf16.msra.mxu0 0
    %1477 = vmatprep.subr.bf16.mxu0 0
    %1478 = vmatpush2.bf16.msra.mxu0 0
    %1479 = vmatprep.subr.bf16.mxu0 0
    %1480 = vmatpush2.bf16.msra.mxu0 0
    %1481 = vmatprep.subr.bf16.mxu0 0
    %1482 = vmatpush2.bf16.msra.mxu0 0
    %1483 = vmatprep.mubr.bf16.mxu0 0
    %1484 = vmatmul.mubr.bf16.gmra.mxu0 %v1449
    %v1485 = vpop.f32.mrf.mxu0
    %v1486 = vadd.f32 %v1447, %v1485
    %v1487 = vpop.f32.mrf.mxu0
    %v1488 = vadd.f32 %v1447, %v1487
    %v1489 = vpop.f32.mrf.mxu0
    %v1490 = vpop.f32.mrf.mxu0
    %1491 = vdwg.mxu0
    %s1492 = sld [smem:[#allocation3 + $0x1]]
    %v1493 = vmul.f32 %v1486, 0.2
    %v1494 = vmul.f32 %v1488, 0.2
    %v1495 = vmax.f32 %v1486, %v1493
    %v1496 = vmax.f32 %v1488, %v1494
    %v1497 = vstv %s1492
    %v1498 = vmul.f32 %v1497, %v1495
    %v1499 = vmul.f32 %v1497, %v1496
    %v1501 = vsel %vm209, %v1404, 0
    %1503 = vmatprep.subr.mxu0 0.0
    %1504 = vmatpush1.msra.mxu0 0.0
    %1505 = vmatprep.subr.mxu0 0.0
    %1506 = vmatpush1.msra.mxu0 0.0
    %1507 = vmatprep.subr.mxu0 0.0
    %1508 = vmatpush1.msra.mxu0 0.0
    %1509 = vmatprep.subr.mxu0 0.0
    %1510 = vmatpush1.msra.mxu0 0.0
    %1511 = vmatprep.subr.mxu0 0.0
    %1512 = vmatpush1.msra.mxu0 0.0
    %1513 = vmatprep.subr.mxu0 0.0
    %1514 = vmatpush1.msra.mxu0 0.0
    %1515 = vmatprep.subr.mxu0 0.0
    %1516 = vmatpush1.msra.mxu0 0.0
    %1517 = vmatprep.subr.mxu0 0.0
    %1518 = vmatpush1.msra.mxu0 0.0
    %1519 = vmatprep.subr.mxu0 %v1403
    %1520 = vmatpush1.msra.mxu0 %v1402
    %1521 = vmatprep.subr.mxu0 %v1401
    %1522 = vmatpush1.msra.mxu0 %v1400
    %1523 = vmatprep.subr.mxu0 %v1399
    %1524 = vmatpush1.msra.mxu0 %v1398
    %1525 = vmatprep.subr.mxu0 %v1397
    %1526 = vmatpush1.msra.mxu0 %v1396
    %1527 = vmatprep.subr.mxu0 %v1395
    %1528 = vmatpush1.msra.mxu0 %v1394
    %1529 = vmatprep.subr.mxu0 %v1393
    %1530 = vmatpush1.msra.mxu0 %v1392
    %1531 = vmatprep.subr.mxu0 %v1391
    %1532 = vmatpush1.msra.mxu0 %v1390
    %1533 = vmatprep.subr.mxu0 %v1389
    %1534 = vmatpush1.msra.mxu0 %v1388
    %1535 = vmatprep.subr.mxu0 0.0
    %1536 = vmatpush2.msra.mxu0 0.0
    %1537 = vmatprep.subr.mxu0 0.0
    %1538 = vmatpush2.msra.mxu0 0.0
    %1539 = vmatprep.subr.mxu0 0.0
    %1540 = vmatpush2.msra.mxu0 0.0
    %1541 = vmatprep.subr.mxu0 0.0
    %1542 = vmatpush2.msra.mxu0 0.0
    %1543 = vmatprep.subr.mxu0 0.0
    %1544 = vmatpush2.msra.mxu0 0.0
    %1545 = vmatprep.subr.mxu0 0.0
    %1546 = vmatpush2.msra.mxu0 0.0
    %1547 = vmatprep.subr.mxu0 0.0
    %1548 = vmatpush2.msra.mxu0 0.0
    %1549 = vmatprep.subr.mxu0 0.0
    %1550 = vmatpush2.msra.mxu0 0.0
    %1551 = vmatprep.subr.mxu0 0.0
    %1552 = vmatpush2.msra.mxu0 0.0
    %1553 = vmatprep.subr.mxu0 0.0
    %1554 = vmatpush2.msra.mxu0 0.0
    %1555 = vmatprep.subr.mxu0 0.0
    %1556 = vmatpush2.msra.mxu0 0.0
    %1557 = vmatprep.subr.mxu0 0.0
    %1558 = vmatpush2.msra.mxu0 0.0
    %1559 = vmatprep.subr.mxu0 0.0
    %1560 = vmatpush2.msra.mxu0 0.0
    %1561 = vmatprep.subr.mxu0 0.0
    %1562 = vmatpush2.msra.mxu0 0.0
    %1563 = vmatprep.subr.mxu0 0.0
    %1564 = vmatpush2.msra.mxu0 0.0
    %1565 = vmatprep.subr.mxu0 0.0
    %1566 = vmatpush2.msra.mxu0 0.0
    %1567 = vmatprep.mubr.f32.mxu0 0.0
    %1568 = vmatmul.mubr.f32.gmra.mxu0 %v1501
    %v1569 = vpop.f32.mrf.mxu0
    %v1570 = vadd.f32 %v1498, %v1569
    %v1571 = vpop.f32.mrf.mxu0
    %v1572 = vadd.f32 %v1499, %v1571
    %1573 = vdwg.mxu0
    %s1574 = sld [smem:[#allocation3 + $0x2]]
    %v1575 = vstv %s1574
    %v1576 = vadd.f32 %v1570, %v1575
    %v1577 = vadd.f32 %v1572, %v1575
    %v1580 = vcombine.low %v1576, %v1577
    %v1582 = vunpack.c.l.s4 1966171168
    %v1583 = vunpack.c.0.s8 %v1582
    %v1584 = vlaneseq
    %v1585 = vshrl.u32 %v1584, 7
    %v1586 = vsub.s32 %v1583, %v1585
    %v1587 = vrot.slane %v1580, %v1586
    %v1589 = vunpack.c.l.s4 1966171168
    %v1590 = vunpack.c.0.s8 %v1589
    %v1591 = vlaneseq
    %v1592 = vshrl.u32 %v1591, 7
    %v1593 = vsub.s32 %v1590, %v1592
    %v1594 = vrot.slane %v1587, %v1593
    %v1596 = vlaneseq
    %vm1597 = vcmp.ge.s32.totalorder %v1596, 0
    %vm1598 = vcmp.lt.s32.totalorder %v1596, 256
    %vm1599 = vmand %vm1597, %vm1598
    %1600 = vst.msk [vmem:[#allocation6] sm:$0x3] %vm1599, %v1594
    // Predicated region
    $region38: #{letter_decoder.1} parent=1 // pred_check
      _
    $region39: #{letter_decoder.1} parent=1 // pred_check_branch
      %1602 = sbr.rel (0) target = $region41
    $region40: #{letter_decoder.1} parent=1 // pred_region
      %s1604 = ssub.s32 32, 32
      %1605 = vsyncadd [#allocation4], %s1604
      %s1607 = sshll.u32 [#allocation6], 4
      %s1608 = int_to_ptr.vmem [resolvable:$true] %s1607
      %1610 = dma.vmem_to_hbm [thread:$0]  %s1608, 32, %s8, [#allocation4]
    $region41: #{letter_decoder.1} parent=1 // pred_fallthru
      _
    // Predicated region
    $region42: #{letter_decoder.1} parent=1 // pred_check
      _
    $region43: #{letter_decoder.1} parent=1 // pred_check_branch
      %1612 = sbr.rel (0) target = $region45
    $region44: #{letter_decoder.1} parent=1 // pred_region
      %1613 = dma.done [#allocation4], 32
    $region45: #{letter_decoder.1} parent=1 // pred_fallthru
      _
    %1614 = vsyncpa [#allocation4], 1
    %1615 = vsyncpa [#allocation5], 1

</llo_original>
